<compile_context>
chip_gen: v7x
topology: tpu7x:2x2x1
jax: 0.10.0
libtpu: 0.0.40
codegen_flags: <defaults>
</compile_context>

<pallas_src>
import jax
import jax.numpy as jnp
from jax.experimental import pallas as pl
from jax.experimental.pallas import tpu as pltpu


_IMG = 28      # 28x28 input is required so the encoder flattens to 20*4*4 = 320
_EPS = 1e-5
_B_MAX = 8     # images per grid step (batch-blocking)

# Widths of the lane-flattened valid regions of each stage (lane = row*28 + col).
_V1 = 23 * _IMG + 23 + 1   # 668: conv1 output corners (y, x   <= 23)
_V2 = 22 * _IMG + 22 + 1   # 639: pool1 output corners (2i, 2j <= 22)
_V3 = 14 * _IMG + 14 + 1   # 407: conv2 output corners (2oh,2ow <= 14)
_V4 = 12 * _IMG + 12 + 1   # 349: pool2 output corners (4i, 4j <= 12)

# Guard the constant-lane-offset invariants (fragile if _IMG / kernel / stride change).
assert 4 * _IMG + 4 + _V1 == _IMG * _IMG      # deepest conv1 tap read in-bounds
assert _IMG + 1 + _V2 == _V1                  # deepest pool1 read in-bounds
assert 2 * (4 * _IMG + 4) + _V3 == _V2        # deepest conv2 tap read in-bounds
assert 2 * _IMG + 2 + _V4 == _V3              # deepest pool2 read in-bounds
assert 4 * 3 * _IMG + 4 * 3 + 1 == _V4        # deepest dense1 gather read in-bounds


# ------------------------------- fused kernel --------------------------------

def _fused_forward_kernel(x_ref, w1_ref, w2_ref, sh2_ref, wd1_ref, b1f_ref,
                          wd2t_ref, bd2_ref, out_ref):
    """B images per grid step; all activations stay in vregs/VMEM."""
    B = x_ref.shape[1]
    xr = x_ref[0]                      # (B, 784), lane = h*28 + w
    w1 = w1_ref[...]                   # (10, 25)  f32
    w2 = w2_ref[...]                   # (20, 250) bf16 (BN2d scale pre-folded)
    sh2 = sh2_ref[...]                 # (20, 1)   BN2d shift
    wd1 = wd1_ref[...]                 # (16, 20, 50) (BN1d scale pre-folded)
    b1f = b1f_ref[...]                 # (1, 50)   BN1d shift (+dense1 bias)

    h_rows = []
    for bi in range(B):                # unrolled: B independent chains
        x_b = xr[bi:bi + 1, :]                                 # (1, 784)

        # conv1: 1 -> 10, 5x5 valid, bias=False.  im2col + one MXU dot.
        cols1 = jnp.concatenate(
            [x_b[:, (ki * _IMG + kj):(ki * _IMG + kj) + _V1]
             for ki in range(5) for kj in range(5)], axis=0)   # (25, 668)
        a = jnp.dot(w1, cols1, preferred_element_type=jnp.float32)   # (10, 668)

        # maxpool 2x2 stride 2, relu.  pool1 (i,j) lives at lane 2i*28+2j.
        p = jnp.maximum(
            jnp.maximum(a[:, 0:_V2], a[:, 1:1 + _V2]),
            jnp.maximum(a[:, _IMG:_IMG + _V2], a[:, _IMG + 1:_IMG + 1 + _V2]))
        p = jnp.maximum(p, 0.0).astype(jnp.bfloat16)           # (10, 639)

        # conv2: 10 -> 20, 5x5 valid, bias=False; im2col + ONE bf16 MXU dot.
        cols2 = jnp.concatenate(
            [p[:, 2 * (ki * _IMG + kj):2 * (ki * _IMG + kj) + _V3]
             for ki in range(5) for kj in range(5)], axis=0)   # (250, 407) bf16
        c2 = jnp.dot(w2, cols2, preferred_element_type=jnp.float32) + sh2  # (20, 407)

        # maxpool 2x2 stride 2, relu.  pool2 (i,j) lives at lane 4i*28+4j.
        m = jnp.maximum(
            jnp.maximum(c2[:, 0:_V4], c2[:, 2:2 + _V4]),
            jnp.maximum(c2[:, 2 * _IMG:2 * _IMG + _V4],
                        c2[:, 2 * _IMG + 2:2 * _IMG + 2 + _V4]))
        m = jnp.maximum(m, 0.0)                                # (20, 349)

        # dense1: 320 -> 50 (BN scale folded into weight, bias into shift).
        # Flatten order: x5[c*16 + i*4 + j] = m[c, 112*i + 4*j]; VPU contraction.
        acc = wd1[0] * m[:, 0:1]                               # first tap direct
        for s in range(1, 16):
            i, j = divmod(s, 4)
            off = 4 * i * _IMG + 4 * j
            acc = acc + wd1[s] * m[:, off:off + 1]             # (20,50)*(20,1)
        h = jnp.sum(acc, axis=0, keepdims=True)                # (1, 50)
        h_rows.append(jnp.maximum(h + b1f, 0.0))               # BN1d shift + relu

    # dense2: 50 -> 10 for all B rows at once -> lane-dense (B, 10) output.
    hmat = jnp.concatenate(h_rows, axis=0)                     # (B, 50)
    o = jnp.dot(hmat, wd2t_ref[...], preferred_element_type=jnp.float32)
    out_ref[0] = jnp.maximum(o + bd2_ref[...], 0.0)            # (B, 10)


# ---------------------------- parameter preparation ---------------------------

def _prepare_kernel_params(p):
    """Fold BN scales into weights / biases into shifts; reorder for the kernel."""
    # conv1 weight (10,1,5,5) -> (10, 25), tap-major columns.
    w1k = p["w1"].reshape(10, 25)

    # conv2 weight (20,10,5,5): fold BN2d scale over out channels, reorder to
    # (20, 250) with column index = tap*10 + in_ch; cast to bf16 for the MXU.
    s2 = p["bn2_gamma"] / jnp.sqrt(p["bn2_var"] + _EPS)
    t2 = p["bn2_beta"] - p["bn2_mean"] * s2
    w2k = ((p["w2"] * s2[:, None, None, None])
           .transpose(0, 2, 3, 1).reshape(20, 250).astype(jnp.bfloat16))
    sh2 = t2.reshape(20, 1)

    # dense1 (50,320): fold BN1d scale, reorder to (16, 20, 50) = [s, c, k] where
    # the original feature index is c*16 + s (s = i*4 + j).
    s1 = p["bnd1_gamma"] / jnp.sqrt(p["bnd1_var"] + _EPS)
    t1 = p["bnd1_beta"] - p["bnd1_mean"] * s1
    wd1k = (p["wd1"] * s1[:, None]).reshape(50, 20, 16).transpose(2, 1, 0)
    b1f = (s1 * p["bd1"] + t1).reshape(1, 50)

    wd2t = p["wd2"].T                                   # (50, 10), lane-dense out
    bd2 = p["bd2"].reshape(1, 10)
    return w1k, w2k, sh2, wd1k, b1f, wd2t, bd2


# ----------------------------------- forward ----------------------------------

@jax.jit
def forward(x, params):
    """Full module forward as a single fused Pallas TPU kernel."""
    w1k, w2k, sh2, wd1k, b1f, wd2t, bd2 = _prepare_kernel_params(params)
    n = x.shape[0]

    # Batch-block B images per grid step; keep the grid length >= 2 when possible
    # so v7x's two TensorCores both get work ("parallel" grid axis).
    b = max(1, min(_B_MAX, n // 2)) if n >= 2 else 1
    n_blocks = pl.cdiv(n, b)
    n_pad = n_blocks * b

    x_flat = x.astype(jnp.float32).reshape(n, _IMG * _IMG)
    if n_pad != n:
        x_flat = jnp.pad(x_flat, ((0, n_pad - n), (0, 0)))
    x_in = x_flat.reshape(n_blocks, b, _IMG * _IMG)

    out = pl.pallas_call(
        _fused_forward_kernel,
        out_shape=jax.ShapeDtypeStruct((n_blocks, b, 10), jnp.float32),
        grid=(n_blocks,),
        in_specs=[
            pl.BlockSpec((1, b, _IMG * _IMG), lambda i: (i, 0, 0)),  # images
            pl.BlockSpec((10, 25), lambda i: (0, 0)),                # conv1 w
            pl.BlockSpec((20, 250), lambda i: (0, 0)),               # conv2 w (bf16, BN-scaled)
            pl.BlockSpec((20, 1), lambda i: (0, 0)),                 # BN2d shift
            pl.BlockSpec((16, 20, 50), lambda i: (0, 0, 0)),         # dense1 w (BN-scaled)
            pl.BlockSpec((1, 50), lambda i: (0, 0)),                 # BN1d shift (+bias)
            pl.BlockSpec((50, 10), lambda i: (0, 0)),                # dense2 w^T
            pl.BlockSpec((1, 10), lambda i: (0, 0)),                 # dense2 bias
        ],
        out_specs=pl.BlockSpec((1, b, 10), lambda i: (i, 0, 0)),
        compiler_params=pltpu.CompilerParams(
            dimension_semantics=("parallel",)),
    )(x_in, w1k, w2k, sh2, wd1k, b1f, wd2t, bd2)
    return out.reshape(n_pad, 10)[:n]


# ------------------------------ plain-JAX reference ---------------------------

def _ref_conv2d(x, w):
    n_, _, hh, ww = x.shape
    oc, _, kh, kw = w.shape
    oh, ow = hh - kh + 1, ww - kw + 1
    out = jnp.zeros((n_, oc, oh, ow), jnp.float32)
    for ki in range(kh):
        for kj in range(kw):
            out = out + jnp.einsum("oc,nchw->nohw", w[:, :, ki, kj],
                                   x[:, :, ki:ki + oh, kj:kj + ow])
    return out


def _ref_maxpool2(x):
    n_, c_, hh, ww = x.shape
    return x.reshape(n_, c_, hh // 2, 2, ww // 2, 2).max(axis=(3, 5))


def _reference_forward(x, p):
    x1 = jnp.maximum(_ref_maxpool2(_ref_conv2d(x, p["w1"])), 0.0)
    a2 = _ref_conv2d(x1, p["w2"])
    s2 = p["bn2_gamma"] / jnp.sqrt(p["bn2_var"] + _EPS)
    a2 = a2 * s2[None, :, None, None] + (p["bn2_beta"]
                                         - p["bn2_mean"] * s2)[None, :, None, None]
    x4 = jnp.maximum(_ref_maxpool2(a2), 0.0)
    x5 = x4.reshape(x.shape[0], 320)
    s1 = p["bnd1_gamma"] / jnp.sqrt(p["bnd1_var"] + _EPS)
    z = (x5 @ p["wd1"].T + p["bd1"]) * s1 + (p["bnd1_beta"] - p["bnd1_mean"] * s1)
    x6 = jnp.maximum(z, 0.0)
    return jnp.maximum(x6 @ p["wd2"].T + p["bd2"], 0.0)


# ---------------------------------- parameters ---------------------------------

def make_params():
    keys = jax.random.split(jax.random.PRNGKey(0), 14)

    def n(k, shape, s):
        return (s * jax.random.normal(k, shape)).astype(jnp.float32)

    return {
        # conv1: Conv2d(1, 10, 5, bias=False)
        "w1": n(keys[0], (10, 1, 5, 5), 0.1),
        # conv2: Conv2d(10, 20, 5, bias=False)
        "w2": n(keys[1], (20, 10, 5, 5), 0.05),
        # BatchNorm2d(20), inference-mode synthetic stats
        "bn2_gamma": 1.0 + n(keys[2], (20,), 0.1),
        "bn2_beta": n(keys[3], (20,), 0.1),
        "bn2_mean": n(keys[4], (20,), 0.1),
        "bn2_var": 1.0 + jnp.abs(n(keys[5], (20,), 0.1)),
        # dense1: Linear(320, 50)
        "wd1": n(keys[6], (50, 320), 0.05),
        "bd1": n(keys[7], (50,), 0.1),
        # BatchNorm1d(50), inference-mode synthetic stats
        "bnd1_gamma": 1.0 + n(keys[8], (50,), 0.1),
        "bnd1_beta": n(keys[9], (50,), 0.1),
        "bnd1_mean": n(keys[10], (50,), 0.1),
        "bnd1_var": 1.0 + jnp.abs(n(keys[11], (50,), 0.1)),
        # dense2: Linear(50, 10)
        "wd2": n(keys[12], (10, 50), 0.1),
        "bd2": n(keys[13], (10,), 0.1),
    }


# ------------------------------------- main -------------------------------------

if __name__ == "__main__":
    params = make_params()

    # Primary check: batch=2 (B=1 per step, grid of 2 "parallel" steps).
    x = jax.random.normal(jax.random.PRNGKey(0), (2, 1, _IMG, _IMG),
                          dtype=jnp.float32)
    out = jax.block_until_ready(forward(x, params))
    assert out.shape == (2, 10), out.shape
    assert bool(jnp.all(jnp.isfinite(out)))
    ref = jax.block_until_ready(_reference_forward(x, params))
    max_err = float(jnp.max(jnp.abs(out - ref)))
    assert bool(jnp.allclose(out, ref, atol=2e-2, rtol=2e-2)), max_err

    # Secondary check: batch=5 exercises batch-blocking (B=2) plus zero padding.
    x5 = jax.random.normal(jax.random.PRNGKey(1), (5, 1, _IMG, _IMG),
                           dtype=jnp.float32)
    out5 = jax.block_until_ready(forward(x5, params))
    ref5 = jax.block_until_ready(_reference_forward(x5, params))
    max_err5 = float(jnp.max(jnp.abs(out5 - ref5)))
    assert out5.shape == (5, 10), out5.shape
    assert bool(jnp.allclose(out5, ref5, atol=2e-2, rtol=2e-2)), max_err5

    print("KERNEL_OK")
</pallas_src>

<mosaic_0001>
module attributes {stable_mosaic.version = 11 : i64} {
  func.func @_fused_forward_kernel(%arg0: i32, %arg1: memref<1x1x784xf32, #tpu.memory_space<vmem>>, %arg2: memref<10x25xf32, #tpu.memory_space<vmem>>, %arg3: memref<20x250xbf16, #tpu.memory_space<vmem>>, %arg4: memref<20x1xf32, #tpu.memory_space<vmem>>, %arg5: memref<16x20x50xf32, #tpu.memory_space<vmem>>, %arg6: memref<1x50xf32, #tpu.memory_space<vmem>>, %arg7: memref<50x10xf32, #tpu.memory_space<vmem>>, %arg8: memref<1x10xf32, #tpu.memory_space<vmem>>, %arg9: memref<1x1x10xf32, #tpu.memory_space<vmem>>) attributes {dimension_semantics = [#tpu.dimension_semantics<parallel>], iteration_bounds = array<i64: 2>, scalar_prefetch = 0 : i64, scratch_operands = 0 : i64, tpu.core_type = #tpu.core_type<tc>, window_params = [{transform_indices = @transform_0, window_bounds = array<i64: 1, 1, 784>}, {pipeline_mode = #tpu.pipeline_mode<synchronous>, transform_indices = @transform_1, window_bounds = array<i64: 10, 25>}, {pipeline_mode = #tpu.pipeline_mode<synchronous>, transform_indices = @transform_2, window_bounds = array<i64: 20, 250>}, {pipeline_mode = #tpu.pipeline_mode<synchronous>, transform_indices = @transform_3, window_bounds = array<i64: 20, 1>}, {pipeline_mode = #tpu.pipeline_mode<synchronous>, transform_indices = @transform_4, window_bounds = array<i64: 16, 20, 50>}, {pipeline_mode = #tpu.pipeline_mode<synchronous>, transform_indices = @transform_5, window_bounds = array<i64: 1, 50>}, {pipeline_mode = #tpu.pipeline_mode<synchronous>, transform_indices = @transform_6, window_bounds = array<i64: 50, 10>}, {pipeline_mode = #tpu.pipeline_mode<synchronous>, transform_indices = @transform_7, window_bounds = array<i64: 1, 10>}, {transform_indices = @transform_8, window_bounds = array<i64: 1, 1, 10>}]} {
    %c0 = arith.constant 0 : index
    %c0_0 = arith.constant 0 : index
    %c0_1 = arith.constant 0 : index
    %0 = vector.load %arg1[%c0, %c0_0, %c0_1] : memref<1x1x784xf32, #tpu.memory_space<vmem>>, vector<1x1x784xf32>
    %1 = vector.shape_cast %0 : vector<1x1x784xf32> to vector<1x784xf32>
    %c0_2 = arith.constant 0 : index
    %c0_3 = arith.constant 0 : index
    %2 = vector.load %arg2[%c0_2, %c0_3] : memref<10x25xf32, #tpu.memory_space<vmem>>, vector<10x25xf32>
    %c0_4 = arith.constant 0 : index
    %c0_5 = arith.constant 0 : index
    %3 = vector.load %arg3[%c0_4, %c0_5] : memref<20x250xbf16, #tpu.memory_space<vmem>>, vector<20x250xbf16>
    %c0_6 = arith.constant 0 : index
    %c0_7 = arith.constant 0 : index
    %4 = vector.load %arg4[%c0_6, %c0_7] : memref<20x1xf32, #tpu.memory_space<vmem>>, vector<20x1xf32>
    %c0_8 = arith.constant 0 : index
    %c0_9 = arith.constant 0 : index
    %c0_10 = arith.constant 0 : index
    %5 = vector.load %arg5[%c0_8, %c0_9, %c0_10] : memref<16x20x50xf32, #tpu.memory_space<vmem>>, vector<16x20x50xf32>
    %c0_11 = arith.constant 0 : index
    %c0_12 = arith.constant 0 : index
    %6 = vector.load %arg6[%c0_11, %c0_12] : memref<1x50xf32, #tpu.memory_space<vmem>>, vector<1x50xf32>
    %7 = vector.extract_strided_slice %1 {offsets = [0, 0], sizes = [1, 668], strides = [1, 1]} : vector<1x784xf32> to vector<1x668xf32>
    %8 = vector.extract_strided_slice %1 {offsets = [0, 1], sizes = [1, 668], strides = [1, 1]} : vector<1x784xf32> to vector<1x668xf32>
    %9 = vector.extract_strided_slice %1 {offsets = [0, 2], sizes = [1, 668], strides = [1, 1]} : vector<1x784xf32> to vector<1x668xf32>
    %10 = vector.extract_strided_slice %1 {offsets = [0, 3], sizes = [1, 668], strides = [1, 1]} : vector<1x784xf32> to vector<1x668xf32>
    %11 = vector.extract_strided_slice %1 {offsets = [0, 4], sizes = [1, 668], strides = [1, 1]} : vector<1x784xf32> to vector<1x668xf32>
    %12 = vector.extract_strided_slice %1 {offsets = [0, 28], sizes = [1, 668], strides = [1, 1]} : vector<1x784xf32> to vector<1x668xf32>
    %13 = vector.extract_strided_slice %1 {offsets = [0, 29], sizes = [1, 668], strides = [1, 1]} : vector<1x784xf32> to vector<1x668xf32>
    %14 = vector.extract_strided_slice %1 {offsets = [0, 30], sizes = [1, 668], strides = [1, 1]} : vector<1x784xf32> to vector<1x668xf32>
    %15 = vector.extract_strided_slice %1 {offsets = [0, 31], sizes = [1, 668], strides = [1, 1]} : vector<1x784xf32> to vector<1x668xf32>
    %16 = vector.extract_strided_slice %1 {offsets = [0, 32], sizes = [1, 668], strides = [1, 1]} : vector<1x784xf32> to vector<1x668xf32>
    %17 = vector.extract_strided_slice %1 {offsets = [0, 56], sizes = [1, 668], strides = [1, 1]} : vector<1x784xf32> to vector<1x668xf32>
    %18 = vector.extract_strided_slice %1 {offsets = [0, 57], sizes = [1, 668], strides = [1, 1]} : vector<1x784xf32> to vector<1x668xf32>
    %19 = vector.extract_strided_slice %1 {offsets = [0, 58], sizes = [1, 668], strides = [1, 1]} : vector<1x784xf32> to vector<1x668xf32>
    %20 = vector.extract_strided_slice %1 {offsets = [0, 59], sizes = [1, 668], strides = [1, 1]} : vector<1x784xf32> to vector<1x668xf32>
    %21 = vector.extract_strided_slice %1 {offsets = [0, 60], sizes = [1, 668], strides = [1, 1]} : vector<1x784xf32> to vector<1x668xf32>
    %22 = vector.extract_strided_slice %1 {offsets = [0, 84], sizes = [1, 668], strides = [1, 1]} : vector<1x784xf32> to vector<1x668xf32>
    %23 = vector.extract_strided_slice %1 {offsets = [0, 85], sizes = [1, 668], strides = [1, 1]} : vector<1x784xf32> to vector<1x668xf32>
    %24 = vector.extract_strided_slice %1 {offsets = [0, 86], sizes = [1, 668], strides = [1, 1]} : vector<1x784xf32> to vector<1x668xf32>
    %25 = vector.extract_strided_slice %1 {offsets = [0, 87], sizes = [1, 668], strides = [1, 1]} : vector<1x784xf32> to vector<1x668xf32>
    %26 = vector.extract_strided_slice %1 {offsets = [0, 88], sizes = [1, 668], strides = [1, 1]} : vector<1x784xf32> to vector<1x668xf32>
    %27 = vector.extract_strided_slice %1 {offsets = [0, 112], sizes = [1, 668], strides = [1, 1]} : vector<1x784xf32> to vector<1x668xf32>
    %28 = vector.extract_strided_slice %1 {offsets = [0, 113], sizes = [1, 668], strides = [1, 1]} : vector<1x784xf32> to vector<1x668xf32>
    %29 = vector.extract_strided_slice %1 {offsets = [0, 114], sizes = [1, 668], strides = [1, 1]} : vector<1x784xf32> to vector<1x668xf32>
    %30 = vector.extract_strided_slice %1 {offsets = [0, 115], sizes = [1, 668], strides = [1, 1]} : vector<1x784xf32> to vector<1x668xf32>
    %31 = vector.extract_strided_slice %1 {offsets = [0, 116], sizes = [1, 668], strides = [1, 1]} : vector<1x784xf32> to vector<1x668xf32>
    %32 = tpu.concatenate %7, %8, %9, %10, %11, %12, %13, %14, %15, %16, %17, %18, %19, %20, %21, %22 in 0 : vector<1x668xf32>, vector<1x668xf32>, vector<1x668xf32>, vector<1x668xf32>, vector<1x668xf32>, vector<1x668xf32>, vector<1x668xf32>, vector<1x668xf32>, vector<1x668xf32>, vector<1x668xf32>, vector<1x668xf32>, vector<1x668xf32>, vector<1x668xf32>, vector<1x668xf32>, vector<1x668xf32>, vector<1x668xf32> -> vector<16x668xf32>
    %33 = tpu.concatenate %23, %24, %25, %26, %27, %28, %29, %30, %31 in 0 : vector<1x668xf32>, vector<1x668xf32>, vector<1x668xf32>, vector<1x668xf32>, vector<1x668xf32>, vector<1x668xf32>, vector<1x668xf32>, vector<1x668xf32>, vector<1x668xf32> -> vector<9x668xf32>
    %34 = tpu.concatenate %32, %33 in 0 : vector<16x668xf32>, vector<9x668xf32> -> vector<25x668xf32>
    %cst = arith.constant dense<0.000000e+00> : vector<10x668xf32>
    %35 = tpu.matmul %2, %34, %cst {dimension_numbers = #tpu.dot_dimension_numbers<[1], [0], [0], [1], [0, 0, 1, 1], [], []>} : vector<10x25xf32>, vector<25x668xf32>, vector<10x668xf32> -> vector<10x668xf32>
    %36 = vector.extract_strided_slice %35 {offsets = [0, 0], sizes = [10, 639], strides = [1, 1]} : vector<10x668xf32> to vector<10x639xf32>
    %37 = vector.extract_strided_slice %35 {offsets = [0, 1], sizes = [10, 639], strides = [1, 1]} : vector<10x668xf32> to vector<10x639xf32>
    %38 = arith.maximumf %36, %37 : vector<10x639xf32>
    %39 = vector.extract_strided_slice %35 {offsets = [0, 28], sizes = [10, 639], strides = [1, 1]} : vector<10x668xf32> to vector<10x639xf32>
    %40 = vector.extract_strided_slice %35 {offsets = [0, 29], sizes = [10, 639], strides = [1, 1]} : vector<10x668xf32> to vector<10x639xf32>
    %41 = arith.maximumf %39, %40 : vector<10x639xf32>
    %42 = arith.maximumf %38, %41 : vector<10x639xf32>
    %cst_13 = arith.constant 0.000000e+00 : f32
    %43 = vector.broadcast %cst_13 : f32 to vector<10x639xf32>
    %44 = arith.maximumf %42, %43 : vector<10x639xf32>
    %45 = arith.truncf %44 : vector<10x639xf32> to vector<10x639xbf16>
    %46 = vector.extract_strided_slice %45 {offsets = [0, 0], sizes = [10, 407], strides = [1, 1]} : vector<10x639xbf16> to vector<10x407xbf16>
    %47 = vector.extract_strided_slice %45 {offsets = [0, 2], sizes = [10, 407], strides = [1, 1]} : vector<10x639xbf16> to vector<10x407xbf16>
    %48 = vector.extract_strided_slice %45 {offsets = [0, 4], sizes = [10, 407], strides = [1, 1]} : vector<10x639xbf16> to vector<10x407xbf16>
    %49 = vector.extract_strided_slice %45 {offsets = [0, 6], sizes = [10, 407], strides = [1, 1]} : vector<10x639xbf16> to vector<10x407xbf16>
    %50 = vector.extract_strided_slice %45 {offsets = [0, 8], sizes = [10, 407], strides = [1, 1]} : vector<10x639xbf16> to vector<10x407xbf16>
    %51 = vector.extract_strided_slice %45 {offsets = [0, 56], sizes = [10, 407], strides = [1, 1]} : vector<10x639xbf16> to vector<10x407xbf16>
    %52 = vector.extract_strided_slice %45 {offsets = [0, 58], sizes = [10, 407], strides = [1, 1]} : vector<10x639xbf16> to vector<10x407xbf16>
    %53 = vector.extract_strided_slice %45 {offsets = [0, 60], sizes = [10, 407], strides = [1, 1]} : vector<10x639xbf16> to vector<10x407xbf16>
    %54 = vector.extract_strided_slice %45 {offsets = [0, 62], sizes = [10, 407], strides = [1, 1]} : vector<10x639xbf16> to vector<10x407xbf16>
    %55 = vector.extract_strided_slice %45 {offsets = [0, 64], sizes = [10, 407], strides = [1, 1]} : vector<10x639xbf16> to vector<10x407xbf16>
    %56 = vector.extract_strided_slice %45 {offsets = [0, 112], sizes = [10, 407], strides = [1, 1]} : vector<10x639xbf16> to vector<10x407xbf16>
    %57 = vector.extract_strided_slice %45 {offsets = [0, 114], sizes = [10, 407], strides = [1, 1]} : vector<10x639xbf16> to vector<10x407xbf16>
    %58 = vector.extract_strided_slice %45 {offsets = [0, 116], sizes = [10, 407], strides = [1, 1]} : vector<10x639xbf16> to vector<10x407xbf16>
    %59 = vector.extract_strided_slice %45 {offsets = [0, 118], sizes = [10, 407], strides = [1, 1]} : vector<10x639xbf16> to vector<10x407xbf16>
    %60 = vector.extract_strided_slice %45 {offsets = [0, 120], sizes = [10, 407], strides = [1, 1]} : vector<10x639xbf16> to vector<10x407xbf16>
    %61 = vector.extract_strided_slice %45 {offsets = [0, 168], sizes = [10, 407], strides = [1, 1]} : vector<10x639xbf16> to vector<10x407xbf16>
    %62 = vector.extract_strided_slice %45 {offsets = [0, 170], sizes = [10, 407], strides = [1, 1]} : vector<10x639xbf16> to vector<10x407xbf16>
    %63 = vector.extract_strided_slice %45 {offsets = [0, 172], sizes = [10, 407], strides = [1, 1]} : vector<10x639xbf16> to vector<10x407xbf16>
    %64 = vector.extract_strided_slice %45 {offsets = [0, 174], sizes = [10, 407], strides = [1, 1]} : vector<10x639xbf16> to vector<10x407xbf16>
    %65 = vector.extract_strided_slice %45 {offsets = [0, 176], sizes = [10, 407], strides = [1, 1]} : vector<10x639xbf16> to vector<10x407xbf16>
    %66 = vector.extract_strided_slice %45 {offsets = [0, 224], sizes = [10, 407], strides = [1, 1]} : vector<10x639xbf16> to vector<10x407xbf16>
    %67 = vector.extract_strided_slice %45 {offsets = [0, 226], sizes = [10, 407], strides = [1, 1]} : vector<10x639xbf16> to vector<10x407xbf16>
    %68 = vector.extract_strided_slice %45 {offsets = [0, 228], sizes = [10, 407], strides = [1, 1]} : vector<10x639xbf16> to vector<10x407xbf16>
    %69 = vector.extract_strided_slice %45 {offsets = [0, 230], sizes = [10, 407], strides = [1, 1]} : vector<10x639xbf16> to vector<10x407xbf16>
    %70 = vector.extract_strided_slice %45 {offsets = [0, 232], sizes = [10, 407], strides = [1, 1]} : vector<10x639xbf16> to vector<10x407xbf16>
    %71 = tpu.concatenate %46, %47, %48, %49, %50, %51, %52, %53, %54, %55, %56, %57, %58, %59, %60, %61 in 0 : vector<10x407xbf16>, vector<10x407xbf16>, vector<10x407xbf16>, vector<10x407xbf16>, vector<10x407xbf16>, vector<10x407xbf16>, vector<10x407xbf16>, vector<10x407xbf16>, vector<10x407xbf16>, vector<10x407xbf16>, vector<10x407xbf16>, vector<10x407xbf16>, vector<10x407xbf16>, vector<10x407xbf16>, vector<10x407xbf16>, vector<10x407xbf16> -> vector<160x407xbf16>
    %72 = tpu.concatenate %62, %63, %64, %65, %66, %67, %68, %69, %70 in 0 : vector<10x407xbf16>, vector<10x407xbf16>, vector<10x407xbf16>, vector<10x407xbf16>, vector<10x407xbf16>, vector<10x407xbf16>, vector<10x407xbf16>, vector<10x407xbf16>, vector<10x407xbf16> -> vector<90x407xbf16>
    %73 = tpu.concatenate %71, %72 in 0 : vector<160x407xbf16>, vector<90x407xbf16> -> vector<250x407xbf16>
    %cst_14 = arith.constant dense<0.000000e+00> : vector<20x407xf32>
    %74 = tpu.matmul %3, %73, %cst_14 {dimension_numbers = #tpu.dot_dimension_numbers<[1], [0], [0], [1], [0, 0, 1, 1], [], []>} : vector<20x250xbf16>, vector<250x407xbf16>, vector<20x407xf32> -> vector<20x407xf32>
    %75 = vector.broadcast %4 : vector<20x1xf32> to vector<20x407xf32>
    %76 = arith.addf %74, %75 : vector<20x407xf32>
    %77 = vector.extract_strided_slice %76 {offsets = [0, 0], sizes = [20, 349], strides = [1, 1]} : vector<20x407xf32> to vector<20x349xf32>
    %78 = vector.extract_strided_slice %76 {offsets = [0, 2], sizes = [20, 349], strides = [1, 1]} : vector<20x407xf32> to vector<20x349xf32>
    %79 = arith.maximumf %77, %78 : vector<20x349xf32>
    %80 = vector.extract_strided_slice %76 {offsets = [0, 56], sizes = [20, 349], strides = [1, 1]} : vector<20x407xf32> to vector<20x349xf32>
    %81 = vector.extract_strided_slice %76 {offsets = [0, 58], sizes = [20, 349], strides = [1, 1]} : vector<20x407xf32> to vector<20x349xf32>
    %82 = arith.maximumf %80, %81 : vector<20x349xf32>
    %83 = arith.maximumf %79, %82 : vector<20x349xf32>
    %cst_15 = arith.constant 0.000000e+00 : f32
    %84 = vector.broadcast %cst_15 : f32 to vector<20x349xf32>
    %85 = arith.maximumf %83, %84 : vector<20x349xf32>
    %86 = vector.extract_strided_slice %5 {offsets = [0, 0, 0], sizes = [1, 20, 50], strides = [1, 1, 1]} : vector<16x20x50xf32> to vector<1x20x50xf32>
    %87 = vector.shape_cast %86 : vector<1x20x50xf32> to vector<20x50xf32>
    %88 = vector.extract_strided_slice %85 {offsets = [0, 0], sizes = [20, 1], strides = [1, 1]} : vector<20x349xf32> to vector<20x1xf32>
    %89 = vector.broadcast %88 : vector<20x1xf32> to vector<20x50xf32>
    %90 = arith.mulf %87, %89 : vector<20x50xf32>
    %91 = vector.extract_strided_slice %5 {offsets = [1, 0, 0], sizes = [1, 20, 50], strides = [1, 1, 1]} : vector<16x20x50xf32> to vector<1x20x50xf32>
    %92 = vector.shape_cast %91 : vector<1x20x50xf32> to vector<20x50xf32>
    %93 = vector.extract_strided_slice %85 {offsets = [0, 4], sizes = [20, 1], strides = [1, 1]} : vector<20x349xf32> to vector<20x1xf32>
    %94 = vector.broadcast %93 : vector<20x1xf32> to vector<20x50xf32>
    %95 = arith.mulf %92, %94 : vector<20x50xf32>
    %96 = arith.addf %90, %95 : vector<20x50xf32>
    %97 = vector.extract_strided_slice %5 {offsets = [2, 0, 0], sizes = [1, 20, 50], strides = [1, 1, 1]} : vector<16x20x50xf32> to vector<1x20x50xf32>
    %98 = vector.shape_cast %97 : vector<1x20x50xf32> to vector<20x50xf32>
    %99 = vector.extract_strided_slice %85 {offsets = [0, 8], sizes = [20, 1], strides = [1, 1]} : vector<20x349xf32> to vector<20x1xf32>
    %100 = vector.broadcast %99 : vector<20x1xf32> to vector<20x50xf32>
    %101 = arith.mulf %98, %100 : vector<20x50xf32>
    %102 = arith.addf %96, %101 : vector<20x50xf32>
    %103 = vector.extract_strided_slice %5 {offsets = [3, 0, 0], sizes = [1, 20, 50], strides = [1, 1, 1]} : vector<16x20x50xf32> to vector<1x20x50xf32>
    %104 = vector.shape_cast %103 : vector<1x20x50xf32> to vector<20x50xf32>
    %105 = vector.extract_strided_slice %85 {offsets = [0, 12], sizes = [20, 1], strides = [1, 1]} : vector<20x349xf32> to vector<20x1xf32>
    %106 = vector.broadcast %105 : vector<20x1xf32> to vector<20x50xf32>
    %107 = arith.mulf %104, %106 : vector<20x50xf32>
    %108 = arith.addf %102, %107 : vector<20x50xf32>
    %109 = vector.extract_strided_slice %5 {offsets = [4, 0, 0], sizes = [1, 20, 50], strides = [1, 1, 1]} : vector<16x20x50xf32> to vector<1x20x50xf32>
    %110 = vector.shape_cast %109 : vector<1x20x50xf32> to vector<20x50xf32>
    %111 = vector.extract_strided_slice %85 {offsets = [0, 112], sizes = [20, 1], strides = [1, 1]} : vector<20x349xf32> to vector<20x1xf32>
    %112 = vector.broadcast %111 : vector<20x1xf32> to vector<20x50xf32>
    %113 = arith.mulf %110, %112 : vector<20x50xf32>
    %114 = arith.addf %108, %113 : vector<20x50xf32>
    %115 = vector.extract_strided_slice %5 {offsets = [5, 0, 0], sizes = [1, 20, 50], strides = [1, 1, 1]} : vector<16x20x50xf32> to vector<1x20x50xf32>
    %116 = vector.shape_cast %115 : vector<1x20x50xf32> to vector<20x50xf32>
    %117 = vector.extract_strided_slice %85 {offsets = [0, 116], sizes = [20, 1], strides = [1, 1]} : vector<20x349xf32> to vector<20x1xf32>
    %118 = vector.broadcast %117 : vector<20x1xf32> to vector<20x50xf32>
    %119 = arith.mulf %116, %118 : vector<20x50xf32>
    %120 = arith.addf %114, %119 : vector<20x50xf32>
    %121 = vector.extract_strided_slice %5 {offsets = [6, 0, 0], sizes = [1, 20, 50], strides = [1, 1, 1]} : vector<16x20x50xf32> to vector<1x20x50xf32>
    %122 = vector.shape_cast %121 : vector<1x20x50xf32> to vector<20x50xf32>
    %123 = vector.extract_strided_slice %85 {offsets = [0, 120], sizes = [20, 1], strides = [1, 1]} : vector<20x349xf32> to vector<20x1xf32>
    %124 = vector.broadcast %123 : vector<20x1xf32> to vector<20x50xf32>
    %125 = arith.mulf %122, %124 : vector<20x50xf32>
    %126 = arith.addf %120, %125 : vector<20x50xf32>
    %127 = vector.extract_strided_slice %5 {offsets = [7, 0, 0], sizes = [1, 20, 50], strides = [1, 1, 1]} : vector<16x20x50xf32> to vector<1x20x50xf32>
    %128 = vector.shape_cast %127 : vector<1x20x50xf32> to vector<20x50xf32>
    %129 = vector.extract_strided_slice %85 {offsets = [0, 124], sizes = [20, 1], strides = [1, 1]} : vector<20x349xf32> to vector<20x1xf32>
    %130 = vector.broadcast %129 : vector<20x1xf32> to vector<20x50xf32>
    %131 = arith.mulf %128, %130 : vector<20x50xf32>
    %132 = arith.addf %126, %131 : vector<20x50xf32>
    %133 = vector.extract_strided_slice %5 {offsets = [8, 0, 0], sizes = [1, 20, 50], strides = [1, 1, 1]} : vector<16x20x50xf32> to vector<1x20x50xf32>
    %134 = vector.shape_cast %133 : vector<1x20x50xf32> to vector<20x50xf32>
    %135 = vector.extract_strided_slice %85 {offsets = [0, 224], sizes = [20, 1], strides = [1, 1]} : vector<20x349xf32> to vector<20x1xf32>
    %136 = vector.broadcast %135 : vector<20x1xf32> to vector<20x50xf32>
    %137 = arith.mulf %134, %136 : vector<20x50xf32>
    %138 = arith.addf %132, %137 : vector<20x50xf32>
    %139 = vector.extract_strided_slice %5 {offsets = [9, 0, 0], sizes = [1, 20, 50], strides = [1, 1, 1]} : vector<16x20x50xf32> to vector<1x20x50xf32>
    %140 = vector.shape_cast %139 : vector<1x20x50xf32> to vector<20x50xf32>
    %141 = vector.extract_strided_slice %85 {offsets = [0, 228], sizes = [20, 1], strides = [1, 1]} : vector<20x349xf32> to vector<20x1xf32>
    %142 = vector.broadcast %141 : vector<20x1xf32> to vector<20x50xf32>
    %143 = arith.mulf %140, %142 : vector<20x50xf32>
    %144 = arith.addf %138, %143 : vector<20x50xf32>
    %145 = vector.extract_strided_slice %5 {offsets = [10, 0, 0], sizes = [1, 20, 50], strides = [1, 1, 1]} : vector<16x20x50xf32> to vector<1x20x50xf32>
    %146 = vector.shape_cast %145 : vector<1x20x50xf32> to vector<20x50xf32>
    %147 = vector.extract_strided_slice %85 {offsets = [0, 232], sizes = [20, 1], strides = [1, 1]} : vector<20x349xf32> to vector<20x1xf32>
    %148 = vector.broadcast %147 : vector<20x1xf32> to vector<20x50xf32>
    %149 = arith.mulf %146, %148 : vector<20x50xf32>
    %150 = arith.addf %144, %149 : vector<20x50xf32>
    %151 = vector.extract_strided_slice %5 {offsets = [11, 0, 0], sizes = [1, 20, 50], strides = [1, 1, 1]} : vector<16x20x50xf32> to vector<1x20x50xf32>
    %152 = vector.shape_cast %151 : vector<1x20x50xf32> to vector<20x50xf32>
    %153 = vector.extract_strided_slice %85 {offsets = [0, 236], sizes = [20, 1], strides = [1, 1]} : vector<20x349xf32> to vector<20x1xf32>
    %154 = vector.broadcast %153 : vector<20x1xf32> to vector<20x50xf32>
    %155 = arith.mulf %152, %154 : vector<20x50xf32>
    %156 = arith.addf %150, %155 : vector<20x50xf32>
    %157 = vector.extract_strided_slice %5 {offsets = [12, 0, 0], sizes = [1, 20, 50], strides = [1, 1, 1]} : vector<16x20x50xf32> to vector<1x20x50xf32>
    %158 = vector.shape_cast %157 : vector<1x20x50xf32> to vector<20x50xf32>
    %159 = vector.extract_strided_slice %85 {offsets = [0, 336], sizes = [20, 1], strides = [1, 1]} : vector<20x349xf32> to vector<20x1xf32>
    %160 = vector.broadcast %159 : vector<20x1xf32> to vector<20x50xf32>
    %161 = arith.mulf %158, %160 : vector<20x50xf32>
    %162 = arith.addf %156, %161 : vector<20x50xf32>
    %163 = vector.extract_strided_slice %5 {offsets = [13, 0, 0], sizes = [1, 20, 50], strides = [1, 1, 1]} : vector<16x20x50xf32> to vector<1x20x50xf32>
    %164 = vector.shape_cast %163 : vector<1x20x50xf32> to vector<20x50xf32>
    %165 = vector.extract_strided_slice %85 {offsets = [0, 340], sizes = [20, 1], strides = [1, 1]} : vector<20x349xf32> to vector<20x1xf32>
    %166 = vector.broadcast %165 : vector<20x1xf32> to vector<20x50xf32>
    %167 = arith.mulf %164, %166 : vector<20x50xf32>
    %168 = arith.addf %162, %167 : vector<20x50xf32>
    %169 = vector.extract_strided_slice %5 {offsets = [14, 0, 0], sizes = [1, 20, 50], strides = [1, 1, 1]} : vector<16x20x50xf32> to vector<1x20x50xf32>
    %170 = vector.shape_cast %169 : vector<1x20x50xf32> to vector<20x50xf32>
    %171 = vector.extract_strided_slice %85 {offsets = [0, 344], sizes = [20, 1], strides = [1, 1]} : vector<20x349xf32> to vector<20x1xf32>
    %172 = vector.broadcast %171 : vector<20x1xf32> to vector<20x50xf32>
    %173 = arith.mulf %170, %172 : vector<20x50xf32>
    %174 = arith.addf %168, %173 : vector<20x50xf32>
    %175 = vector.extract_strided_slice %5 {offsets = [15, 0, 0], sizes = [1, 20, 50], strides = [1, 1, 1]} : vector<16x20x50xf32> to vector<1x20x50xf32>
    %176 = vector.shape_cast %175 : vector<1x20x50xf32> to vector<20x50xf32>
    %177 = vector.extract_strided_slice %85 {offsets = [0, 348], sizes = [20, 1], strides = [1, 1]} : vector<20x349xf32> to vector<20x1xf32>
    %178 = vector.broadcast %177 : vector<20x1xf32> to vector<20x50xf32>
    %179 = arith.mulf %176, %178 : vector<20x50xf32>
    %180 = arith.addf %174, %179 : vector<20x50xf32>
    %cst_16 = arith.constant dense<0.000000e+00> : vector<50xf32>
    %181 = vector.multi_reduction <add>, %180, %cst_16 [0] : vector<20x50xf32> to vector<50xf32>
    %182 = vector.shape_cast %181 : vector<50xf32> to vector<1x50xf32>
    %183 = arith.addf %182, %6 : vector<1x50xf32>
    %cst_17 = arith.constant 0.000000e+00 : f32
    %184 = vector.broadcast %cst_17 : f32 to vector<1x50xf32>
    %185 = arith.maximumf %183, %184 : vector<1x50xf32>
    %c0_18 = arith.constant 0 : index
    %c0_19 = arith.constant 0 : index
    %186 = vector.load %arg7[%c0_18, %c0_19] : memref<50x10xf32, #tpu.memory_space<vmem>>, vector<50x10xf32>
    %cst_20 = arith.constant dense<0.000000e+00> : vector<1x10xf32>
    %187 = tpu.matmul %185, %186, %cst_20 {dimension_numbers = #tpu.dot_dimension_numbers<[1], [0], [0], [1], [0, 0, 1, 1], [], []>} : vector<1x50xf32>, vector<50x10xf32>, vector<1x10xf32> -> vector<1x10xf32>
    %c0_21 = arith.constant 0 : index
    %c0_22 = arith.constant 0 : index
    %188 = vector.load %arg8[%c0_21, %c0_22] : memref<1x10xf32, #tpu.memory_space<vmem>>, vector<1x10xf32>
    %189 = arith.addf %187, %188 : vector<1x10xf32>
    %cst_23 = arith.constant 0.000000e+00 : f32
    %190 = vector.broadcast %cst_23 : f32 to vector<1x10xf32>
    %191 = arith.maximumf %189, %190 : vector<1x10xf32>
    %c0_24 = arith.constant 0 : index
    %c0_25 = arith.constant 0 : index
    %c0_26 = arith.constant 0 : index
    %192 = vector.load %arg9[%c0_24, %c0_25, %c0_26] : memref<1x1x10xf32, #tpu.memory_space<vmem>>, vector<1x1x10xf32>
    %193 = vector.shape_cast %192 : vector<1x1x10xf32> to vector<1x10xf32>
    %194 = vector.shape_cast %191 : vector<1x10xf32> to vector<1x1x10xf32>
    tpu.vector_store %arg9[%c0_24, %c0_25, %c0_26], %194 {strides = array<i32>} : memref<1x1x10xf32, #tpu.memory_space<vmem>>, vector<1x1x10xf32>,
    return
  }
  func.func @transform_0(%arg0: i32) -> (i32, i32, i32) {
    %c0_i32 = arith.constant 0 : i32
    %c0_i32_0 = arith.constant 0 : i32
    %c0_i32_1 = arith.constant 0 : i32
    return %arg0, %c0_i32, %c0_i32_0 : i32, i32, i32
  }
  func.func @transform_1(%arg0: i32) -> (i32, i32) {
    %c0_i32 = arith.constant 0 : i32
    %c0_i32_0 = arith.constant 0 : i32
    %c0_i32_1 = arith.constant 0 : i32
    return %c0_i32, %c0_i32_0 : i32, i32
  }
  func.func @transform_2(%arg0: i32) -> (i32, i32) {
    %c0_i32 = arith.constant 0 : i32
    %c0_i32_0 = arith.constant 0 : i32
    %c0_i32_1 = arith.constant 0 : i32
    return %c0_i32, %c0_i32_0 : i32, i32
  }
  func.func @transform_3(%arg0: i32) -> (i32, i32) {
    %c0_i32 = arith.constant 0 : i32
    %c0_i32_0 = arith.constant 0 : i32
    %c0_i32_1 = arith.constant 0 : i32
    return %c0_i32, %c0_i32_0 : i32, i32
  }
  func.func @transform_4(%arg0: i32) -> (i32, i32, i32) {
    %c0_i32 = arith.constant 0 : i32
    %c0_i32_0 = arith.constant 0 : i32
    %c0_i32_1 = arith.constant 0 : i32
    %c0_i32_2 = arith.constant 0 : i32
    return %c0_i32, %c0_i32_0, %c0_i32_1 : i32, i32, i32
  }
  func.func @transform_5(%arg0: i32) -> (i32, i32) {
    %c0_i32 = arith.constant 0 : i32
    %c0_i32_0 = arith.constant 0 : i32
    %c0_i32_1 = arith.constant 0 : i32
    return %c0_i32, %c0_i32_0 : i32, i32
  }
  func.func @transform_6(%arg0: i32) -> (i32, i32) {
    %c0_i32 = arith.constant 0 : i32
    %c0_i32_0 = arith.constant 0 : i32
    %c0_i32_1 = arith.constant 0 : i32
    return %c0_i32, %c0_i32_0 : i32, i32
  }
  func.func @transform_7(%arg0: i32) -> (i32, i32) {
    %c0_i32 = arith.constant 0 : i32
    %c0_i32_0 = arith.constant 0 : i32
    %c0_i32_1 = arith.constant 0 : i32
    return %c0_i32, %c0_i32_0 : i32, i32
  }
  func.func @transform_8(%arg0: i32) -> (i32, i32, i32) {
    %c0_i32 = arith.constant 0 : i32
    %c0_i32_0 = arith.constant 0 : i32
    %c0_i32_1 = arith.constant 0 : i32
    return %arg0, %c0_i32, %c0_i32_0 : i32, i32, i32
  }
}

</mosaic_0001>

<llo_original>
// kernel: forward.1
$region0: #{forward.1}
  #allocation0 [shape = 'u32[]', space=smem, size = 0x4, offset = 0x4, fixed_abs, tag = 'smem constant byte address 0x4 - core index']
  #allocation1 [shape = 'u32[144,128]{1,0:T(1,128)}', space=vmem, size = 0x12000, scoped, tag = 'internal scratch']
  %s0 = inlined_call_operand.vmem [shape: f32[2,1,784], index: 0, kind: input, shape index: {}]
  %s1 = inlined_call_operand.vmem [shape: f32[10,25], index: 1, kind: input, shape index: {}]
  %s2 = inlined_call_operand.vmem [shape: bf16[20,250], index: 2, kind: input, shape index: {}]
  %s3 = inlined_call_operand.vmem [shape: f32[20,1], index: 3, kind: input, shape index: {}]
  %s4 = inlined_call_operand.vmem [shape: f32[16,20,50], index: 4, kind: input, shape index: {}]
  %s5 = inlined_call_operand.vmem [shape: f32[1,50], index: 5, kind: input, shape index: {}]
  %s6 = inlined_call_operand.vmem [shape: f32[50,10], index: 6, kind: input, shape index: {}]
  %s7 = inlined_call_operand.vmem [shape: f32[1,10], index: 7, kind: input, shape index: {}]
  %s8 = inlined_call_operand.hbm [shape: f32[2,1,10], index: 8, kind: output, shape index: {}]
  %s9 = sld [smem:[#allocation0]]
  $region65: #{forward.1} parent=0
    _
  %s11 = ssub.s32 1, %s9
  %s12 = scalar_select 0, %s11, %s9
  $region1: #{forward.1} parent=0
    #allocation2 [shape = 'u8[1024]{0}', space=vmem, size = 0x400, scoped, tag = 'output window, operand 0']
    #allocation3 [shape = 's32[2]{0}', space=sflag, size = 0x8, scoped, tag = 'scoped memory for forward.1']
    %13 = vsyncpa [#allocation3], 0
    %s14 = scalar_lea.sflag [#allocation3], 1
    %15 = vsyncpa %s14, 0
    loop: start=0, step=1, limit=4
    $region2: #{forward.1} parent=1 // loop_pre_header
      _
    $region3: #{forward.1} parent=1 // loop_header
      %s17 = sphi 0, %s21
      %p18 = scmp.ge.s32.totalorder %s17, 4
      %s27 = sphi 0, %s29
      %s30 = sphi 0, %s27
      %s31 = sphi 0, %s30
      %s47 = sphi 0, %s31
      %s51 = sphi 0, %s51
      %s53 = sphi 0, %s51
      %s54 = sphi 0, %s53
      %s68 = sphi 0, %s54
      %s72 = sphi 0, %s72
      %s74 = sphi 0, %s72
      %s75 = sphi 0, %s74
      %s89 = sphi 0, %s75
      %s93 = sphi 0, %s93
      %s95 = sphi 0, %s93
      %s96 = sphi 0, %s95
      %s110 = sphi 0, %s96
      %s114 = sphi 0, %s114
      %s116 = sphi 0, %s114
      %s117 = sphi 0, %s116
      %s131 = sphi 0, %s117
      %s135 = sphi 0, %s135
      %s137 = sphi 0, %s135
      %s138 = sphi 0, %s137
      %s152 = sphi 0, %s138
      %s156 = sphi 0, %s156
      %s158 = sphi 0, %s156
      %s159 = sphi 0, %s158
      %s173 = sphi 0, %s159
      %s177 = sphi 0, %s177
      %s179 = sphi 0, %s177
      %s180 = sphi 0, %s179
      %s194 = sphi 0, %s180
      %s200 = sphi 0, %s202
      %s203 = sphi 0, %s200
      %s204 = sphi 0, %s203
      %s220 = sphi 0, %s204
    $region4: #{forward.1} parent=1 // loop_header_branch
      %20 = sbr.rel (%p18) target = $region8
    $region5: #{forward.1} parent=1 // loop_body
      %s22 = ssub.s32 %s17, 1
      %s23 = ssub.s32 %s17, 2
      %s24 = sadd.s32 %s17, 1
      %s25 = ssub.s32 %s17, %s24
      %p26 = scmp.eq.s32.totalorder %s25, 0
      %s28 = sadd.s32 %s27, 1
      %s29 = scalar_select %p26, %s27, %s28
      %p32 = pneg %p26
      %p33 = scmp.eq.s32.totalorder %s17, 1
      %p34 = por %p32, %p33
      %p35 = scmp.ne.s32.totalorder %s27, %s30
      %p36 = scmp.eq.s32.totalorder %s17, 0
      %p37 = por %p35, %p36
      %p38 = scmp.ne.s32.totalorder %s27, %s30
      %p39 = scmp.eq.s32.totalorder %s22, 1
      %p40 = por %p38, %p39
      %p41 = scmp.ne.s32.totalorder %s30, %s31
      %p42 = scmp.eq.s32.totalorder %s22, 0
      %p43 = por %p41, %p42
      %p44 = scmp.ne.s32.totalorder %s30, %s31
      %p45 = scmp.eq.s32.totalorder %s23, 1
      %p46 = por %p44, %p45
      %p48 = scmp.ne.s32.totalorder %s31, %s47
      %p49 = scmp.eq.s32.totalorder %s23, 0
      %p50 = por %p48, %p49
      %s52 = sadd.s32 %s51, 1
      %p55 = scmp.eq.s32.totalorder %s17, 1
      %p56 = scmp.ne.s32.totalorder %s51, %s53
      %p57 = scmp.eq.s32.totalorder %s17, 0
      %p58 = por %p56, %p57
      %p59 = scmp.ne.s32.totalorder %s51, %s53
      %p60 = scmp.eq.s32.totalorder %s22, 1
      %p61 = por %p59, %p60
      %p62 = scmp.ne.s32.totalorder %s53, %s54
      %p63 = scmp.eq.s32.totalorder %s22, 0
      %p64 = por %p62, %p63
      %p65 = scmp.ne.s32.totalorder %s53, %s54
      %p66 = scmp.eq.s32.totalorder %s23, 1
      %p67 = por %p65, %p66
      %p69 = scmp.ne.s32.totalorder %s54, %s68
      %p70 = scmp.eq.s32.totalorder %s23, 0
      %p71 = por %p69, %p70
      %s73 = sadd.s32 %s72, 1
      %p76 = scmp.eq.s32.totalorder %s17, 1
      %p77 = scmp.ne.s32.totalorder %s72, %s74
      %p78 = scmp.eq.s32.totalorder %s17, 0
      %p79 = por %p77, %p78
      %p80 = scmp.ne.s32.totalorder %s72, %s74
      %p81 = scmp.eq.s32.totalorder %s22, 1
      %p82 = por %p80, %p81
      %p83 = scmp.ne.s32.totalorder %s74, %s75
      %p84 = scmp.eq.s32.totalorder %s22, 0
      %p85 = por %p83, %p84
      %p86 = scmp.ne.s32.totalorder %s74, %s75
      %p87 = scmp.eq.s32.totalorder %s23, 1
      %p88 = por %p86, %p87
      %p90 = scmp.ne.s32.totalorder %s75, %s89
      %p91 = scmp.eq.s32.totalorder %s23, 0
      %p92 = por %p90, %p91
      %s94 = sadd.s32 %s93, 1
      %p97 = scmp.eq.s32.totalorder %s17, 1
      %p98 = scmp.ne.s32.totalorder %s93, %s95
      %p99 = scmp.eq.s32.totalorder %s17, 0
      %p100 = por %p98, %p99
      %p101 = scmp.ne.s32.totalorder %s93, %s95
      %p102 = scmp.eq.s32.totalorder %s22, 1
      %p103 = por %p101, %p102
      %p104 = scmp.ne.s32.totalorder %s95, %s96
      %p105 = scmp.eq.s32.totalorder %s22, 0
      %p106 = por %p104, %p105
      %p107 = scmp.ne.s32.totalorder %s95, %s96
      %p108 = scmp.eq.s32.totalorder %s23, 1
      %p109 = por %p107, %p108
      %p111 = scmp.ne.s32.totalorder %s96, %s110
      %p112 = scmp.eq.s32.totalorder %s23, 0
      %p113 = por %p111, %p112
      %s115 = sadd.s32 %s114, 1
      %p118 = scmp.eq.s32.totalorder %s17, 1
      %p119 = scmp.ne.s32.totalorder %s114, %s116
      %p120 = scmp.eq.s32.totalorder %s17, 0
      %p121 = por %p119, %p120
      %p122 = scmp.ne.s32.totalorder %s114, %s116
      %p123 = scmp.eq.s32.totalorder %s22, 1
      %p124 = por %p122, %p123
      %p125 = scmp.ne.s32.totalorder %s116, %s117
      %p126 = scmp.eq.s32.totalorder %s22, 0
      %p127 = por %p125, %p126
      %p128 = scmp.ne.s32.totalorder %s116, %s117
      %p129 = scmp.eq.s32.totalorder %s23, 1
      %p130 = por %p128, %p129
      %p132 = scmp.ne.s32.totalorder %s117, %s131
      %p133 = scmp.eq.s32.totalorder %s23, 0
      %p134 = por %p132, %p133
      %s136 = sadd.s32 %s135, 1
      %p139 = scmp.eq.s32.totalorder %s17, 1
      %p140 = scmp.ne.s32.totalorder %s135, %s137
      %p141 = scmp.eq.s32.totalorder %s17, 0
      %p142 = por %p140, %p141
      %p143 = scmp.ne.s32.totalorder %s135, %s137
      %p144 = scmp.eq.s32.totalorder %s22, 1
      %p145 = por %p143, %p144
      %p146 = scmp.ne.s32.totalorder %s137, %s138
      %p147 = scmp.eq.s32.totalorder %s22, 0
      %p148 = por %p146, %p147
      %p149 = scmp.ne.s32.totalorder %s137, %s138
      %p150 = scmp.eq.s32.totalorder %s23, 1
      %p151 = por %p149, %p150
      %p153 = scmp.ne.s32.totalorder %s138, %s152
      %p154 = scmp.eq.s32.totalorder %s23, 0
      %p155 = por %p153, %p154
      %s157 = sadd.s32 %s156, 1
      %p160 = scmp.eq.s32.totalorder %s17, 1
      %p161 = scmp.ne.s32.totalorder %s156, %s158
      %p162 = scmp.eq.s32.totalorder %s17, 0
      %p163 = por %p161, %p162
      %p164 = scmp.ne.s32.totalorder %s156, %s158
      %p165 = scmp.eq.s32.totalorder %s22, 1
      %p166 = por %p164, %p165
      %p167 = scmp.ne.s32.totalorder %s158, %s159
      %p168 = scmp.eq.s32.totalorder %s22, 0
      %p169 = por %p167, %p168
      %p170 = scmp.ne.s32.totalorder %s158, %s159
      %p171 = scmp.eq.s32.totalorder %s23, 1
      %p172 = por %p170, %p171
      %p174 = scmp.ne.s32.totalorder %s159, %s173
      %p175 = scmp.eq.s32.totalorder %s23, 0
      %p176 = por %p174, %p175
      %s178 = sadd.s32 %s177, 1
      %p181 = scmp.eq.s32.totalorder %s17, 1
      %p182 = scmp.ne.s32.totalorder %s177, %s179
      %p183 = scmp.eq.s32.totalorder %s17, 0
      %p184 = por %p182, %p183
      %p185 = scmp.ne.s32.totalorder %s177, %s179
      %p186 = scmp.eq.s32.totalorder %s22, 1
      %p187 = por %p185, %p186
      %p188 = scmp.ne.s32.totalorder %s179, %s180
      %p189 = scmp.eq.s32.totalorder %s22, 0
      %p190 = por %p188, %p189
      %p191 = scmp.ne.s32.totalorder %s179, %s180
      %p192 = scmp.eq.s32.totalorder %s23, 1
      %p193 = por %p191, %p192
      %p195 = scmp.ne.s32.totalorder %s180, %s194
      %p196 = scmp.eq.s32.totalorder %s23, 0
      %p197 = por %p195, %p196
      %s198 = ssub.s32 %s17, %s24
      %p199 = scmp.eq.s32.totalorder %s198, 0
      %s201 = sadd.s32 %s200, 1
      %s202 = scalar_select %p199, %s200, %s201
      %p205 = pneg %p199
      %p206 = scmp.eq.s32.totalorder %s17, 1
      %p207 = por %p205, %p206
      %p208 = scmp.ne.s32.totalorder %s200, %s203
      %p209 = scmp.eq.s32.totalorder %s17, 0
      %p210 = por %p208, %p209
      %p211 = scmp.ne.s32.totalorder %s200, %s203
      %p212 = scmp.eq.s32.totalorder %s22, 1
      %p213 = por %p211, %p212
      %p214 = scmp.ne.s32.totalorder %s203, %s204
      %p215 = scmp.eq.s32.totalorder %s22, 0
      %p216 = por %p214, %p215
      %p217 = scmp.ne.s32.totalorder %s203, %s204
      %p218 = scmp.eq.s32.totalorder %s23, 1
      %p219 = por %p217, %p218
      %p221 = scmp.ne.s32.totalorder %s204, %s220
      %p222 = scmp.eq.s32.totalorder %s23, 0
      %p223 = por %p221, %p222
      %p224 = scmp.le.s32.totalorder 1, %s17
      %p225 = scmp.lt.s32.totalorder %s17, 3
      %p226 = pnand %p224, %p225
      %p227 = pneg %p226
      // Predicated region
      $region9: #{forward.1} parent=5 // pred_check
        _
      $region10: #{forward.1} parent=5 // pred_check_branch
        %229 = sbr.rel (%p226) target = $region12
      $region11: #{forward.1} parent=5 // pred_region
        %s230 = ssub.s32 %s17, 1
        // Predicated region
        $region13: #{forward.1} parent=11 // pred_check
          %p231 = pneg %p64
        $region14: #{forward.1} parent=11 // pred_check_branch
          %233 = sbr.rel (%p231) target = $region16
        $region15: #{forward.1} parent=11 // pred_region
          _
        $region16: #{forward.1} parent=11 // pred_fallthru
          _
        // Predicated region
        $region17: #{forward.1} parent=11 // pred_check
          %p234 = pneg %p85
        $region18: #{forward.1} parent=11 // pred_check_branch
          %236 = sbr.rel (%p234) target = $region20
        $region19: #{forward.1} parent=11 // pred_region
          _
        $region20: #{forward.1} parent=11 // pred_fallthru
          _
        // Predicated region
        $region21: #{forward.1} parent=11 // pred_check
          %p237 = pneg %p106
        $region22: #{forward.1} parent=11 // pred_check_branch
          %239 = sbr.rel (%p237) target = $region24
        $region23: #{forward.1} parent=11 // pred_region
          _
        $region24: #{forward.1} parent=11 // pred_fallthru
          _
        // Predicated region
        $region25: #{forward.1} parent=11 // pred_check
          %p240 = pneg %p127
        $region26: #{forward.1} parent=11 // pred_check_branch
          %242 = sbr.rel (%p240) target = $region28
        $region27: #{forward.1} parent=11 // pred_region
          _
        $region28: #{forward.1} parent=11 // pred_fallthru
          _
        // Predicated region
        $region29: #{forward.1} parent=11 // pred_check
          %p243 = pneg %p148
        $region30: #{forward.1} parent=11 // pred_check_branch
          %245 = sbr.rel (%p243) target = $region32
        $region31: #{forward.1} parent=11 // pred_region
          _
        $region32: #{forward.1} parent=11 // pred_fallthru
          _
        // Predicated region
        $region33: #{forward.1} parent=11 // pred_check
          %p246 = pneg %p169
        $region34: #{forward.1} parent=11 // pred_check_branch
          %248 = sbr.rel (%p246) target = $region36
        $region35: #{forward.1} parent=11 // pred_region
          _
        $region36: #{forward.1} parent=11 // pred_fallthru
          _
        // Predicated region
        $region37: #{forward.1} parent=11 // pred_check
          %p249 = pneg %p190
        $region38: #{forward.1} parent=11 // pred_check_branch
          %251 = sbr.rel (%p249) target = $region40
        $region39: #{forward.1} parent=11 // pred_region
          _
        $region40: #{forward.1} parent=11 // pred_fallthru
          _
      $region12: #{forward.1} parent=5 // pred_fallthru
        _
      %p252 = scmp.lt.s32.totalorder %s17, 2
      // Predicated region
      $region41: #{forward.1} parent=5 // pred_check
        %p253 = pneg %p252
      $region42: #{forward.1} parent=5 // pred_check_branch
        %255 = sbr.rel (%p253) target = $region44
      $region43: #{forward.1} parent=5 // pred_region
        // Predicated region
        $region45: #{forward.1} parent=43 // pred_check
          %p256 = pneg %p37
        $region46: #{forward.1} parent=43 // pred_check_branch
          %258 = sbr.rel (%p256) target = $region48
        $region47: #{forward.1} parent=43 // pred_region
          %p259 = scmp.lt.s32.totalorder %s17, 1
          %s260 = scalar_select %p259, %s17, 1
          %s261 = smul.addr %s260, 7
          %s262 = scalar_lea.vmem %s0, %s261
        $region48: #{forward.1} parent=43 // pred_fallthru
          _
      $region44: #{forward.1} parent=5 // pred_fallthru
        _
      %p263 = scmp.le.s32.totalorder 1, %s17
      %p264 = scmp.lt.s32.totalorder %s17, 3
      %p265 = pnand %p263, %p264
      %p266 = pneg %p265
      // Predicated region
      $region49: #{forward.1} parent=5 // pred_check
        _
      $region50: #{forward.1} parent=5 // pred_check_branch
        %268 = sbr.rel (%p265) target = $region52
      $region51: #{forward.1} parent=5 // pred_region
        %s269 = ssub.s32 %s17, 1
        %p270 = scmp.lt.s32.totalorder %s22, 1
        %s271 = scalar_select %p270, %s22, 1
        %s272 = smul.addr %s271, 7
        %s273 = scalar_lea.vmem %s0, %s272
        %p274 = pneg %p43
        %p275 = pneg %p40
        %p276 = pneg %p64
        %p277 = pneg %p61
        %p278 = pneg %p85
        %p279 = pneg %p82
        %p280 = pneg %p106
        %p281 = pneg %p103
        %p282 = pneg %p127
        %p283 = pneg %p124
        %p284 = pneg %p148
        %p285 = pneg %p145
        %p286 = pneg %p169
        %p287 = pneg %p166
        %p288 = pneg %p190
        %p289 = pneg %p187
        %p290 = pneg %p216
        %p291 = pneg %p213
        %s292 = sand.u32 %s203, 1
        %s293 = scalar_lea.sflag [#allocation3], %s292
        %s294 = sand.u32 %s203, 1
        %s295 = scalar_lea.vmem [#allocation2], %s294
        %p296 = scmp.lt.s32.totalorder %s22, 1
        %s297 = scalar_select %p296, %s22, 1
        %s298 = smul.addr %s297, 7
        %s299 = scalar_lea.vmem %s0, %s298
        %v300 = vld [vmem:[%s299] sm:$0x7f]
        %v301 = vld [vmem:[%s1] sm:$0xff]
        %v302 = vld [vmem:[%s1 + $0x8] sm:$0x3]
        %v303 = vld [vmem:[%s2] sm:$0xff]
        %v304 = vld [vmem:[%s2 + $0x8] sm:$0xff]
        %v305 = vld [vmem:[%s2 + $0x10] sm:$0x33]
        %v306 = vld [vmem:[%s3] sm:$0xff]
        %v307 = vld [vmem:[%s3 + $0x8] sm:$0xff]
        %v308 = vld [vmem:[%s3 + $0x10] sm:$0xf]
        %v309 = vld [vmem:[%s4] sm:$0xff]
        %v310 = vld [vmem:[%s4 + $0x8] sm:$0xff]
        %v311 = vld [vmem:[%s4 + $0x10] sm:$0xf]
        %v312 = vld [vmem:[%s4 + $0x18] sm:$0xff]
        %v313 = vld [vmem:[%s4 + $0x20] sm:$0xff]
        %v314 = vld [vmem:[%s4 + $0x28] sm:$0xf]
        %v315 = vld [vmem:[%s4 + $0x30] sm:$0xff]
        %v316 = vld [vmem:[%s4 + $0x38] sm:$0xff]
        %v317 = vld [vmem:[%s4 + $0x40] sm:$0xf]
        %v318 = vld [vmem:[%s4 + $0x48] sm:$0xff]
        %v319 = vld [vmem:[%s4 + $0x50] sm:$0xff]
        %v320 = vld [vmem:[%s4 + $0x58] sm:$0xf]
        %v321 = vld [vmem:[%s4 + $0x60] sm:$0xff]
        %v322 = vld [vmem:[%s4 + $0x68] sm:$0xff]
        %v323 = vld [vmem:[%s4 + $0x70] sm:$0xf]
        %v324 = vld [vmem:[%s4 + $0x78] sm:$0xff]
        %v325 = vld [vmem:[%s4 + $0x80] sm:$0xff]
        %v326 = vld [vmem:[%s4 + $0x88] sm:$0xf]
        %v327 = vld [vmem:[%s4 + $0x90] sm:$0xff]
        %v328 = vld [vmem:[%s4 + $0x98] sm:$0xff]
        %v329 = vld [vmem:[%s4 + $0xa0] sm:$0xf]
        %v330 = vld [vmem:[%s4 + $0xa8] sm:$0xff]
        %v331 = vld [vmem:[%s4 + $0xb0] sm:$0xff]
        %v332 = vld [vmem:[%s4 + $0xb8] sm:$0xf]
        %v333 = vld [vmem:[%s4 + $0xc0] sm:$0xff]
        %v334 = vld [vmem:[%s4 + $0xc8] sm:$0xff]
        %v335 = vld [vmem:[%s4 + $0xd0] sm:$0xf]
        %v336 = vld [vmem:[%s4 + $0xd8] sm:$0xff]
        %v337 = vld [vmem:[%s4 + $0xe0] sm:$0xff]
        %v338 = vld [vmem:[%s4 + $0xe8] sm:$0xf]
        %v339 = vld [vmem:[%s4 + $0xf0] sm:$0xff]
        %v340 = vld [vmem:[%s4 + $0xf8] sm:$0xff]
        %v341 = vld [vmem:[%s4 + $0x100] sm:$0xf]
        %v342 = vld [vmem:[%s4 + $0x108] sm:$0xff]
        %v343 = vld [vmem:[%s4 + $0x110] sm:$0xff]
        %v344 = vld [vmem:[%s4 + $0x118] sm:$0xf]
        %v345 = vld [vmem:[%s4 + $0x120] sm:$0xff]
        %v346 = vld [vmem:[%s4 + $0x128] sm:$0xff]
        %v347 = vld [vmem:[%s4 + $0x130] sm:$0xf]
        %v348 = vld [vmem:[%s4 + $0x138] sm:$0xff]
        %v349 = vld [vmem:[%s4 + $0x140] sm:$0xff]
        %v350 = vld [vmem:[%s4 + $0x148] sm:$0xf]
        %v351 = vld [vmem:[%s4 + $0x150] sm:$0xff]
        %v352 = vld [vmem:[%s4 + $0x158] sm:$0xff]
        %v353 = vld [vmem:[%s4 + $0x160] sm:$0xf]
        %v354 = vld [vmem:[%s4 + $0x168] sm:$0xff]
        %v355 = vld [vmem:[%s4 + $0x170] sm:$0xff]
        %v356 = vld [vmem:[%s4 + $0x178] sm:$0xf]
        %v357 = vld [vmem:[%s5] sm:$0x1]
        %v359 = vlaneseq
        %v360 = vshrl.u32 %v359, 7
        %v361 = vsub.s32 0, %v360
        %v362 = vrot.slane %v300, %v361
        %v363 = vlaneseq
        %v364 = vshrl.u32 %v363, 7
        %v365 = vsub.s32 1, %v364
        %v366 = vrot.slane %v300, %v365
        %v367 = vlaneseq
        %v368 = vshrl.u32 %v367, 7
        %v369 = vsub.s32 2, %v368
        %v370 = vrot.slane %v300, %v369
        %v371 = vlaneseq
        %v372 = vshrl.u32 %v371, 7
        %v373 = vsub.s32 3, %v372
        %v374 = vrot.slane %v300, %v373
        %v375 = vlaneseq
        %v376 = vshrl.u32 %v375, 7
        %v377 = vsub.s32 4, %v376
        %v378 = vrot.slane %v300, %v377
        %v379 = vlaneseq
        %v380 = vshrl.u32 %v379, 7
        %v381 = vsub.s32 5, %v380
        %v382 = vrot.slane %v300, %v381
        %389 = vrot.lane.b32.xlu0 %v362, 127
        %v390 = vpop.permute.xlu0 %389
        %391 = vrot.lane.b32.xlu0 %v366, 127
        %v392 = vpop.permute.xlu0 %391
        %393 = vrot.lane.b32.xlu0 %v370, 127
        %v394 = vpop.permute.xlu0 %393
        %395 = vrot.lane.b32.xlu0 %v374, 127
        %v396 = vpop.permute.xlu0 %395
        %397 = vrot.lane.b32.xlu0 %v378, 127
        %v398 = vpop.permute.xlu0 %397
        %399 = vrot.lane.b32.xlu0 %v382, 127
        %v400 = vpop.permute.xlu0 %399
        %vm401 = vcmask 1039360
        %v402 = vsel %vm401, %v390, %v392
        %v403 = vsel %vm401, %v392, %v394
        %v404 = vsel %vm401, %v394, %v396
        %v405 = vsel %vm401, %v396, %v398
        %v406 = vsel %vm401, %v398, %v400
        %413 = vrot.lane.b32.xlu0 %v362, 126
        %v414 = vpop.permute.xlu0 %413
        %415 = vrot.lane.b32.xlu0 %v366, 126
        %v416 = vpop.permute.xlu0 %415
        %417 = vrot.lane.b32.xlu0 %v370, 126
        %v418 = vpop.permute.xlu0 %417
        %419 = vrot.lane.b32.xlu0 %v374, 126
        %v420 = vpop.permute.xlu0 %419
        %421 = vrot.lane.b32.xlu0 %v378, 126
        %v422 = vpop.permute.xlu0 %421
        %423 = vrot.lane.b32.xlu0 %v382, 126
        %v424 = vpop.permute.xlu0 %423
        %vm425 = vcmask 1031168
        %v426 = vsel %vm425, %v414, %v416
        %v427 = vsel %vm425, %v416, %v418
        %v428 = vsel %vm425, %v418, %v420
        %v429 = vsel %vm425, %v420, %v422
        %v430 = vsel %vm425, %v422, %v424
        %437 = vrot.lane.b32.xlu0 %v362, 125
        %v438 = vpop.permute.xlu0 %437
        %439 = vrot.lane.b32.xlu0 %v366, 125
        %v440 = vpop.permute.xlu0 %439
        %441 = vrot.lane.b32.xlu0 %v370, 125
        %v442 = vpop.permute.xlu0 %441
        %443 = vrot.lane.b32.xlu0 %v374, 125
        %v444 = vpop.permute.xlu0 %443
        %445 = vrot.lane.b32.xlu0 %v378, 125
        %v446 = vpop.permute.xlu0 %445
        %447 = vrot.lane.b32.xlu0 %v382, 125
        %v448 = vpop.permute.xlu0 %447
        %vm449 = vcmask 1022976
        %v450 = vsel %vm449, %v438, %v440
        %v451 = vsel %vm449, %v440, %v442
        %v452 = vsel %vm449, %v442, %v444
        %v453 = vsel %vm449, %v444, %v446
        %v454 = vsel %vm449, %v446, %v448
        %461 = vrot.lane.b32.xlu0 %v362, 124
        %v462 = vpop.permute.xlu0 %461
        %463 = vrot.lane.b32.xlu0 %v366, 124
        %v464 = vpop.permute.xlu0 %463
        %465 = vrot.lane.b32.xlu0 %v370, 124
        %v466 = vpop.permute.xlu0 %465
        %467 = vrot.lane.b32.xlu0 %v374, 124
        %v468 = vpop.permute.xlu0 %467
        %469 = vrot.lane.b32.xlu0 %v378, 124
        %v470 = vpop.permute.xlu0 %469
        %471 = vrot.lane.b32.xlu0 %v382, 124
        %v472 = vpop.permute.xlu0 %471
        %vm473 = vcmask 1014784
        %v474 = vsel %vm473, %v462, %v464
        %v475 = vsel %vm473, %v464, %v466
        %v476 = vsel %vm473, %v466, %v468
        %v477 = vsel %vm473, %v468, %v470
        %v478 = vsel %vm473, %v470, %v472
        %485 = vrot.lane.b32.xlu0 %v362, 100
        %v486 = vpop.permute.xlu0 %485
        %487 = vrot.lane.b32.xlu0 %v366, 100
        %v488 = vpop.permute.xlu0 %487
        %489 = vrot.lane.b32.xlu0 %v370, 100
        %v490 = vpop.permute.xlu0 %489
        %491 = vrot.lane.b32.xlu0 %v374, 100
        %v492 = vpop.permute.xlu0 %491
        %493 = vrot.lane.b32.xlu0 %v378, 100
        %v494 = vpop.permute.xlu0 %493
        %495 = vrot.lane.b32.xlu0 %v382, 100
        %v496 = vpop.permute.xlu0 %495
        %vm497 = vcmask 818176
        %v498 = vsel %vm497, %v486, %v488
        %v499 = vsel %vm497, %v488, %v490
        %v500 = vsel %vm497, %v490, %v492
        %v501 = vsel %vm497, %v492, %v494
        %v502 = vsel %vm497, %v494, %v496
        %509 = vrot.lane.b32.xlu0 %v362, 99
        %v510 = vpop.permute.xlu0 %509
        %511 = vrot.lane.b32.xlu0 %v366, 99
        %v512 = vpop.permute.xlu0 %511
        %513 = vrot.lane.b32.xlu0 %v370, 99
        %v514 = vpop.permute.xlu0 %513
        %515 = vrot.lane.b32.xlu0 %v374, 99
        %v516 = vpop.permute.xlu0 %515
        %517 = vrot.lane.b32.xlu0 %v378, 99
        %v518 = vpop.permute.xlu0 %517
        %519 = vrot.lane.b32.xlu0 %v382, 99
        %v520 = vpop.permute.xlu0 %519
        %vm521 = vcmask 809984
        %v522 = vsel %vm521, %v510, %v512
        %v523 = vsel %vm521, %v512, %v514
        %v524 = vsel %vm521, %v514, %v516
        %v525 = vsel %vm521, %v516, %v518
        %v526 = vsel %vm521, %v518, %v520
        %533 = vrot.lane.b32.xlu0 %v362, 98
        %v534 = vpop.permute.xlu0 %533
        %535 = vrot.lane.b32.xlu0 %v366, 98
        %v536 = vpop.permute.xlu0 %535
        %537 = vrot.lane.b32.xlu0 %v370, 98
        %v538 = vpop.permute.xlu0 %537
        %539 = vrot.lane.b32.xlu0 %v374, 98
        %v540 = vpop.permute.xlu0 %539
        %541 = vrot.lane.b32.xlu0 %v378, 98
        %v542 = vpop.permute.xlu0 %541
        %543 = vrot.lane.b32.xlu0 %v382, 98
        %v544 = vpop.permute.xlu0 %543
        %vm545 = vcmask 801792
        %v546 = vsel %vm545, %v534, %v536
        %v547 = vsel %vm545, %v536, %v538
        %v548 = vsel %vm545, %v538, %v540
        %v549 = vsel %vm545, %v540, %v542
        %v550 = vsel %vm545, %v542, %v544
        %557 = vrot.lane.b32.xlu0 %v362, 97
        %v558 = vpop.permute.xlu0 %557
        %559 = vrot.lane.b32.xlu0 %v366, 97
        %v560 = vpop.permute.xlu0 %559
        %561 = vrot.lane.b32.xlu0 %v370, 97
        %v562 = vpop.permute.xlu0 %561
        %563 = vrot.lane.b32.xlu0 %v374, 97
        %v564 = vpop.permute.xlu0 %563
        %565 = vrot.lane.b32.xlu0 %v378, 97
        %v566 = vpop.permute.xlu0 %565
        %567 = vrot.lane.b32.xlu0 %v382, 97
        %v568 = vpop.permute.xlu0 %567
        %vm569 = vcmask 793600
        %v570 = vsel %vm569, %v558, %v560
        %v571 = vsel %vm569, %v560, %v562
        %v572 = vsel %vm569, %v562, %v564
        %v573 = vsel %vm569, %v564, %v566
        %v574 = vsel %vm569, %v566, %v568
        %581 = vrot.lane.b32.xlu0 %v362, 96
        %v582 = vpop.permute.xlu0 %581
        %583 = vrot.lane.b32.xlu0 %v366, 96
        %v584 = vpop.permute.xlu0 %583
        %585 = vrot.lane.b32.xlu0 %v370, 96
        %v586 = vpop.permute.xlu0 %585
        %587 = vrot.lane.b32.xlu0 %v374, 96
        %v588 = vpop.permute.xlu0 %587
        %589 = vrot.lane.b32.xlu0 %v378, 96
        %v590 = vpop.permute.xlu0 %589
        %591 = vrot.lane.b32.xlu0 %v382, 96
        %v592 = vpop.permute.xlu0 %591
        %vm593 = vcmask 785408
        %v594 = vsel %vm593, %v582, %v584
        %v595 = vsel %vm593, %v584, %v586
        %v596 = vsel %vm593, %v586, %v588
        %v597 = vsel %vm593, %v588, %v590
        %v598 = vsel %vm593, %v590, %v592
        %605 = vrot.lane.b32.xlu0 %v362, 72
        %v606 = vpop.permute.xlu0 %605
        %607 = vrot.lane.b32.xlu0 %v366, 72
        %v608 = vpop.permute.xlu0 %607
        %609 = vrot.lane.b32.xlu0 %v370, 72
        %v610 = vpop.permute.xlu0 %609
        %611 = vrot.lane.b32.xlu0 %v374, 72
        %v612 = vpop.permute.xlu0 %611
        %613 = vrot.lane.b32.xlu0 %v378, 72
        %v614 = vpop.permute.xlu0 %613
        %615 = vrot.lane.b32.xlu0 %v382, 72
        %v616 = vpop.permute.xlu0 %615
        %vm617 = vcmask 588800
        %v618 = vsel %vm617, %v606, %v608
        %v619 = vsel %vm617, %v608, %v610
        %v620 = vsel %vm617, %v610, %v612
        %v621 = vsel %vm617, %v612, %v614
        %v622 = vsel %vm617, %v614, %v616
        %629 = vrot.lane.b32.xlu0 %v362, 71
        %v630 = vpop.permute.xlu0 %629
        %631 = vrot.lane.b32.xlu0 %v366, 71
        %v632 = vpop.permute.xlu0 %631
        %633 = vrot.lane.b32.xlu0 %v370, 71
        %v634 = vpop.permute.xlu0 %633
        %635 = vrot.lane.b32.xlu0 %v374, 71
        %v636 = vpop.permute.xlu0 %635
        %637 = vrot.lane.b32.xlu0 %v378, 71
        %v638 = vpop.permute.xlu0 %637
        %639 = vrot.lane.b32.xlu0 %v382, 71
        %v640 = vpop.permute.xlu0 %639
        %vm641 = vcmask 580608
        %v642 = vsel %vm641, %v630, %v632
        %v643 = vsel %vm641, %v632, %v634
        %v644 = vsel %vm641, %v634, %v636
        %v645 = vsel %vm641, %v636, %v638
        %v646 = vsel %vm641, %v638, %v640
        %653 = vrot.lane.b32.xlu0 %v362, 70
        %v654 = vpop.permute.xlu0 %653
        %655 = vrot.lane.b32.xlu0 %v366, 70
        %v656 = vpop.permute.xlu0 %655
        %657 = vrot.lane.b32.xlu0 %v370, 70
        %v658 = vpop.permute.xlu0 %657
        %659 = vrot.lane.b32.xlu0 %v374, 70
        %v660 = vpop.permute.xlu0 %659
        %661 = vrot.lane.b32.xlu0 %v378, 70
        %v662 = vpop.permute.xlu0 %661
        %663 = vrot.lane.b32.xlu0 %v382, 70
        %v664 = vpop.permute.xlu0 %663
        %vm665 = vcmask 572416
        %v666 = vsel %vm665, %v654, %v656
        %v667 = vsel %vm665, %v656, %v658
        %v668 = vsel %vm665, %v658, %v660
        %v669 = vsel %vm665, %v660, %v662
        %v670 = vsel %vm665, %v662, %v664
        %677 = vrot.lane.b32.xlu0 %v362, 69
        %v678 = vpop.permute.xlu0 %677
        %679 = vrot.lane.b32.xlu0 %v366, 69
        %v680 = vpop.permute.xlu0 %679
        %681 = vrot.lane.b32.xlu0 %v370, 69
        %v682 = vpop.permute.xlu0 %681
        %683 = vrot.lane.b32.xlu0 %v374, 69
        %v684 = vpop.permute.xlu0 %683
        %685 = vrot.lane.b32.xlu0 %v378, 69
        %v686 = vpop.permute.xlu0 %685
        %687 = vrot.lane.b32.xlu0 %v382, 69
        %v688 = vpop.permute.xlu0 %687
        %vm689 = vcmask 564224
        %v690 = vsel %vm689, %v678, %v680
        %v691 = vsel %vm689, %v680, %v682
        %v692 = vsel %vm689, %v682, %v684
        %v693 = vsel %vm689, %v684, %v686
        %v694 = vsel %vm689, %v686, %v688
        %701 = vrot.lane.b32.xlu0 %v362, 68
        %v702 = vpop.permute.xlu0 %701
        %703 = vrot.lane.b32.xlu0 %v366, 68
        %v704 = vpop.permute.xlu0 %703
        %705 = vrot.lane.b32.xlu0 %v370, 68
        %v706 = vpop.permute.xlu0 %705
        %707 = vrot.lane.b32.xlu0 %v374, 68
        %v708 = vpop.permute.xlu0 %707
        %709 = vrot.lane.b32.xlu0 %v378, 68
        %v710 = vpop.permute.xlu0 %709
        %711 = vrot.lane.b32.xlu0 %v382, 68
        %v712 = vpop.permute.xlu0 %711
        %vm713 = vcmask 556032
        %v714 = vsel %vm713, %v702, %v704
        %v715 = vsel %vm713, %v704, %v706
        %v716 = vsel %vm713, %v706, %v708
        %v717 = vsel %vm713, %v708, %v710
        %v718 = vsel %vm713, %v710, %v712
        %725 = vrot.lane.b32.xlu0 %v362, 44
        %v726 = vpop.permute.xlu0 %725
        %727 = vrot.lane.b32.xlu0 %v366, 44
        %v728 = vpop.permute.xlu0 %727
        %729 = vrot.lane.b32.xlu0 %v370, 44
        %v730 = vpop.permute.xlu0 %729
        %731 = vrot.lane.b32.xlu0 %v374, 44
        %v732 = vpop.permute.xlu0 %731
        %733 = vrot.lane.b32.xlu0 %v378, 44
        %v734 = vpop.permute.xlu0 %733
        %735 = vrot.lane.b32.xlu0 %v382, 44
        %v736 = vpop.permute.xlu0 %735
        %vm737 = vcmask 359424
        %v738 = vsel %vm737, %v726, %v728
        %v739 = vsel %vm737, %v728, %v730
        %v740 = vsel %vm737, %v730, %v732
        %v741 = vsel %vm737, %v732, %v734
        %v742 = vsel %vm737, %v734, %v736
        %vm749 = vcmask 1040384
        %v750 = vsel %vm749, %v362, %v402
        %v751 = vsel %vm749, %v366, %v403
        %v752 = vsel %vm749, %v370, %v404
        %v753 = vsel %vm749, %v374, %v405
        %v754 = vsel %vm749, %v378, %v406
        %v755 = vsel %vm749, %v382, %v400
        %vm756 = vcmask 1041408
        %v757 = vsel %vm756, %v750, %v426
        %v758 = vsel %vm756, %v751, %v427
        %v759 = vsel %vm756, %v752, %v428
        %v760 = vsel %vm756, %v753, %v429
        %v761 = vsel %vm756, %v754, %v430
        %v762 = vsel %vm756, %v755, %v424
        %vm763 = vcmask 1042432
        %v764 = vsel %vm763, %v757, %v450
        %v765 = vsel %vm763, %v758, %v451
        %v766 = vsel %vm763, %v759, %v452
        %v767 = vsel %vm763, %v760, %v453
        %v768 = vsel %vm763, %v761, %v454
        %v769 = vsel %vm763, %v762, %v448
        %vm770 = vcmask 1043456
        %v771 = vsel %vm770, %v764, %v474
        %v772 = vsel %vm770, %v765, %v475
        %v773 = vsel %vm770, %v766, %v476
        %v774 = vsel %vm770, %v767, %v477
        %v775 = vsel %vm770, %v768, %v478
        %v776 = vsel %vm770, %v769, %v472
        %vm777 = vcmask 1044480
        %v778 = vsel %vm777, %v771, %v498
        %v779 = vsel %vm777, %v772, %v499
        %v780 = vsel %vm777, %v773, %v500
        %v781 = vsel %vm777, %v774, %v501
        %v782 = vsel %vm777, %v775, %v502
        %v783 = vsel %vm777, %v776, %v496
        %vm784 = vcmask 1045504
        %v785 = vsel %vm784, %v778, %v522
        %v786 = vsel %vm784, %v779, %v523
        %v787 = vsel %vm784, %v780, %v524
        %v788 = vsel %vm784, %v781, %v525
        %v789 = vsel %vm784, %v782, %v526
        %v790 = vsel %vm784, %v783, %v520
        %vm791 = vcmask 1046528
        %v792 = vsel %vm791, %v785, %v546
        %v793 = vsel %vm791, %v786, %v547
        %v794 = vsel %vm791, %v787, %v548
        %v795 = vsel %vm791, %v788, %v549
        %v796 = vsel %vm791, %v789, %v550
        %v797 = vsel %vm791, %v790, %v544
        %v798 = vsel %vm749, %v570, %v594
        %v799 = vsel %vm749, %v571, %v595
        %v800 = vsel %vm749, %v572, %v596
        %v801 = vsel %vm749, %v573, %v597
        %v802 = vsel %vm749, %v574, %v598
        %v803 = vsel %vm749, %v568, %v592
        %v804 = vsel %vm756, %v798, %v618
        %v805 = vsel %vm756, %v799, %v619
        %v806 = vsel %vm756, %v800, %v620
        %v807 = vsel %vm756, %v801, %v621
        %v808 = vsel %vm756, %v802, %v622
        %v809 = vsel %vm756, %v803, %v616
        %v810 = vsel %vm763, %v804, %v642
        %v811 = vsel %vm763, %v805, %v643
        %v812 = vsel %vm763, %v806, %v644
        %v813 = vsel %vm763, %v807, %v645
        %v814 = vsel %vm763, %v808, %v646
        %v815 = vsel %vm763, %v809, %v640
        %v816 = vsel %vm770, %v810, %v666
        %v817 = vsel %vm770, %v811, %v667
        %v818 = vsel %vm770, %v812, %v668
        %v819 = vsel %vm770, %v813, %v669
        %v820 = vsel %vm770, %v814, %v670
        %v821 = vsel %vm770, %v815, %v664
        %v822 = vsel %vm777, %v816, %v690
        %v823 = vsel %vm777, %v817, %v691
        %v824 = vsel %vm777, %v818, %v692
        %v825 = vsel %vm777, %v819, %v693
        %v826 = vsel %vm777, %v820, %v694
        %v827 = vsel %vm777, %v821, %v688
        %v828 = vsel %vm784, %v822, %v714
        %v829 = vsel %vm784, %v823, %v715
        %v830 = vsel %vm784, %v824, %v716
        %v831 = vsel %vm784, %v825, %v717
        %v832 = vsel %vm784, %v826, %v718
        %v833 = vsel %vm784, %v827, %v712
        %v834 = vsel %vm791, %v828, %v738
        %v835 = vsel %vm791, %v829, %v739
        %v836 = vsel %vm791, %v830, %v740
        %v837 = vsel %vm791, %v831, %v741
        %v838 = vsel %vm791, %v832, %v742
        %v839 = vsel %vm791, %v833, %v736
        %v840 = vlaneseq
        %v841 = vshrl.u32 %v840, 7
        %v842 = vsub.s32 6, %v841
        %v843 = vrot.slane %v300, %v842
        %844 = vrot.lane.b32.xlu0 %v362, 101
        %v845 = vpop.permute.xlu0 %844
        %846 = vrot.lane.b32.xlu0 %v366, 101
        %v847 = vpop.permute.xlu0 %846
        %848 = vrot.lane.b32.xlu0 %v370, 101
        %v849 = vpop.permute.xlu0 %848
        %850 = vrot.lane.b32.xlu0 %v374, 101
        %v851 = vpop.permute.xlu0 %850
        %852 = vrot.lane.b32.xlu0 %v378, 101
        %v853 = vpop.permute.xlu0 %852
        %854 = vrot.lane.b32.xlu0 %v382, 101
        %v855 = vpop.permute.xlu0 %854
        %856 = vrot.lane.b32.xlu0 %v843, 101
        %v857 = vpop.permute.xlu0 %856
        %vm858 = vcmask 826368
        %v859 = vsel %vm858, %v845, %v847
        %v860 = vsel %vm858, %v847, %v849
        %v861 = vsel %vm858, %v849, %v851
        %v862 = vsel %vm858, %v851, %v853
        %v863 = vsel %vm858, %v853, %v855
        %v864 = vsel %vm858, %v855, %v857
        %871 = vrot.lane.b32.xlu0 %v843, 100
        %v872 = vpop.permute.xlu0 %871
        %v873 = vsel %vm497, %v496, %v872
        %875 = vrot.lane.b32.xlu0 %v843, 99
        %v876 = vpop.permute.xlu0 %875
        %v877 = vsel %vm521, %v520, %v876
        %879 = vrot.lane.b32.xlu0 %v843, 98
        %v880 = vpop.permute.xlu0 %879
        %v881 = vsel %vm545, %v544, %v880
        %883 = vrot.lane.b32.xlu0 %v843, 97
        %v884 = vpop.permute.xlu0 %883
        %v885 = vsel %vm569, %v568, %v884
        %v886 = vsel %vm770, %v764, %v859
        %v887 = vsel %vm770, %v765, %v860
        %v888 = vsel %vm770, %v766, %v861
        %v889 = vsel %vm770, %v767, %v862
        %v890 = vsel %vm770, %v768, %v863
        %v891 = vsel %vm770, %v769, %v864
        %v892 = vsel %vm777, %v886, %v498
        %v893 = vsel %vm777, %v887, %v499
        %v894 = vsel %vm777, %v888, %v500
        %v895 = vsel %vm777, %v889, %v501
        %v896 = vsel %vm777, %v890, %v502
        %v897 = vsel %vm777, %v891, %v873
        %v898 = vsel %vm784, %v892, %v522
        %v899 = vsel %vm784, %v893, %v523
        %v900 = vsel %vm784, %v894, %v524
        %v901 = vsel %vm784, %v895, %v525
        %v902 = vsel %vm784, %v896, %v526
        %v903 = vsel %vm784, %v897, %v877
        %v904 = vsel %vm791, %v898, %v546
        %v905 = vsel %vm791, %v899, %v547
        %v906 = vsel %vm791, %v900, %v548
        %v907 = vsel %vm791, %v901, %v549
        %v908 = vsel %vm791, %v902, %v550
        %v909 = vsel %vm791, %v903, %v881
        %916 = vrot.lane.b32.xlu0 %v904, 43
        %v917 = vpop.permute.xlu0 %916
        %918 = vrot.lane.b32.xlu0 %v905, 43
        %v919 = vpop.permute.xlu0 %918
        %920 = vrot.lane.b32.xlu0 %v906, 43
        %v921 = vpop.permute.xlu0 %920
        %922 = vrot.lane.b32.xlu0 %v907, 43
        %v923 = vpop.permute.xlu0 %922
        %924 = vrot.lane.b32.xlu0 %v908, 43
        %v925 = vpop.permute.xlu0 %924
        %926 = vrot.lane.b32.xlu0 %v909, 43
        %v927 = vpop.permute.xlu0 %926
        %928 = vrot.lane.b32.xlu0 %v570, 43
        %v929 = vpop.permute.xlu0 %928
        %930 = vrot.lane.b32.xlu0 %v571, 43
        %v931 = vpop.permute.xlu0 %930
        %932 = vrot.lane.b32.xlu0 %v572, 43
        %v933 = vpop.permute.xlu0 %932
        %934 = vrot.lane.b32.xlu0 %v573, 43
        %v935 = vpop.permute.xlu0 %934
        %936 = vrot.lane.b32.xlu0 %v574, 43
        %v937 = vpop.permute.xlu0 %936
        %938 = vrot.lane.b32.xlu0 %v885, 43
        %v939 = vpop.permute.xlu0 %938
        %vm940 = vcmask 351232
        %v941 = vsel %vm940, %v917, %v919
        %v942 = vsel %vm940, %v919, %v921
        %v943 = vsel %vm940, %v921, %v923
        %v944 = vsel %vm940, %v923, %v925
        %v945 = vsel %vm940, %v925, %v927
        %v946 = vsel %vm940, %v929, %v931
        %v947 = vsel %vm940, %v931, %v933
        %v948 = vsel %vm940, %v933, %v935
        %v949 = vsel %vm940, %v935, %v937
        %v950 = vsel %vm940, %v937, %v939
        %vm957 = vcmask 203776
        %v959 = vsel %vm957, %v301, 0
        %v962 = vsel %vm957, %v302, 0
        %v964 = vsel %vm749, %v946, 0
        %v966 = vsel %vm749, %v947, 0
        %v968 = vsel %vm749, %v948, 0
        %v970 = vsel %vm749, %v949, 0
        %v972 = vsel %vm749, %v950, 0
        %v974 = vsel %vm749, %v939, 0
        %976 = vmatprep.subr.mxu0 %v793
        %977 = vmatpush1.msra.mxu0 %v792
        %978 = vmatprep.subr.mxu0 %v835
        %979 = vmatpush1.msra.mxu0 %v834
        %980 = vmatprep.subr.mxu0 %v942
        %981 = vmatpush1.msra.mxu0 %v941
        %982 = vmatprep.subr.mxu0 %v966
        %983 = vmatpush1.msra.mxu0 %v964
        %984 = vmatprep.subr.mxu0 0.0
        %985 = vmatpush1.msra.mxu0 0.0
        %986 = vmatprep.subr.mxu0 0.0
        %987 = vmatpush1.msra.mxu0 0.0
        %988 = vmatprep.subr.mxu0 0.0
        %989 = vmatpush1.msra.mxu0 0.0
        %990 = vmatprep.subr.mxu0 0.0
        %991 = vmatpush1.msra.mxu0 0.0
        %992 = vmatprep.subr.mxu0 0.0
        %993 = vmatpush1.msra.mxu0 0.0
        %994 = vmatprep.subr.mxu0 0.0
        %995 = vmatpush1.msra.mxu0 0.0
        %996 = vmatprep.subr.mxu0 0.0
        %997 = vmatpush1.msra.mxu0 0.0
        %998 = vmatprep.subr.mxu0 0.0
        %999 = vmatpush1.msra.mxu0 0.0
        %1000 = vmatprep.subr.mxu0 0.0
        %1001 = vmatpush1.msra.mxu0 0.0
        %1002 = vmatprep.subr.mxu0 0.0
        %1003 = vmatpush1.msra.mxu0 0.0
        %1004 = vmatprep.subr.mxu0 0.0
        %1005 = vmatpush1.msra.mxu0 0.0
        %1006 = vmatprep.subr.mxu0 0.0
        %1007 = vmatpush1.msra.mxu0 0.0
        %1008 = vmatprep.subr.mxu0 0.0
        %1009 = vmatpush1.msra.mxu0 0.0
        %1010 = vmatprep.subr.mxu0 0.0
        %1011 = vmatpush1.msra.mxu0 0.0
        %1012 = vmatprep.subr.mxu0 0.0
        %1013 = vmatpush1.msra.mxu0 0.0
        %1014 = vmatprep.subr.mxu0 0.0
        %1015 = vmatpush1.msra.mxu0 0.0
        %1016 = vmatprep.subr.mxu0 0.0
        %1017 = vmatpush1.msra.mxu0 0.0
        %1018 = vmatprep.subr.mxu0 0.0
        %1019 = vmatpush1.msra.mxu0 0.0
        %1020 = vmatprep.subr.mxu0 0.0
        %1021 = vmatpush1.msra.mxu0 0.0
        %1022 = vmatprep.subr.mxu0 0.0
        %1023 = vmatpush1.msra.mxu0 0.0
        %1024 = vmatprep.subr.mxu0 0.0
        %1025 = vmatpush1.msra.mxu0 0.0
        %1026 = vmatprep.subr.mxu0 0.0
        %1027 = vmatpush1.msra.mxu0 0.0
        %1028 = vmatprep.subr.mxu0 0.0
        %1029 = vmatpush1.msra.mxu0 0.0
        %1030 = vmatprep.subr.mxu0 0.0
        %1031 = vmatpush1.msra.mxu0 0.0
        %1032 = vmatprep.subr.mxu0 0.0
        %1033 = vmatpush1.msra.mxu0 0.0
        %1034 = vmatprep.subr.mxu0 0.0
        %1035 = vmatpush1.msra.mxu0 0.0
        %1036 = vmatprep.subr.mxu0 0.0
        %1037 = vmatpush1.msra.mxu0 0.0
        %1038 = vmatprep.subr.mxu0 0.0
        %1039 = vmatpush1.msra.mxu0 0.0
        %1040 = vmatprep.mubr.f32.mxu0 0.0
        %1041 = vmatmul.mubr.f32.gmra.mrb[0].mxu0 %v959
        %v1042 = vpop.f32.mrb[0].mxu0
        %v1043 = vadd.f32 0.0, %v1042
        %v1044 = vpop.f32.mrb[0].mxu0
        %v1045 = vadd.f32 0.0, %v1044
        %1046 = vmatprep.mubr.f32.mxu0 0.0
        %1047 = vmatmul.mubr.f32.gmra.mrb[0].mxu0 %v962
        %v1048 = vpop.f32.mrb[0].mxu0
        %v1049 = vadd.f32 0.0, %v1048
        %v1050 = vpop.f32.mrb[0].mxu0
        %v1051 = vadd.f32 0.0, %v1050
        %1052 = vdwg.mxu0
        %1053 = vmatprep.subr.mxu0 %v795
        %1054 = vmatpush1.msra.mxu0 %v794
        %1055 = vmatprep.subr.mxu0 %v837
        %1056 = vmatpush1.msra.mxu0 %v836
        %1057 = vmatprep.subr.mxu0 %v944
        %1058 = vmatpush1.msra.mxu0 %v943
        %1059 = vmatprep.subr.mxu0 %v970
        %1060 = vmatpush1.msra.mxu0 %v968
        %1061 = vmatprep.subr.mxu0 0.0
        %1062 = vmatpush1.msra.mxu0 0.0
        %1063 = vmatprep.subr.mxu0 0.0
        %1064 = vmatpush1.msra.mxu0 0.0
        %1065 = vmatprep.subr.mxu0 0.0
        %1066 = vmatpush1.msra.mxu0 0.0
        %1067 = vmatprep.subr.mxu0 0.0
        %1068 = vmatpush1.msra.mxu0 0.0
        %1069 = vmatprep.subr.mxu0 0.0
        %1070 = vmatpush1.msra.mxu0 0.0
        %1071 = vmatprep.subr.mxu0 0.0
        %1072 = vmatpush1.msra.mxu0 0.0
        %1073 = vmatprep.subr.mxu0 0.0
        %1074 = vmatpush1.msra.mxu0 0.0
        %1075 = vmatprep.subr.mxu0 0.0
        %1076 = vmatpush1.msra.mxu0 0.0
        %1077 = vmatprep.subr.mxu0 0.0
        %1078 = vmatpush1.msra.mxu0 0.0
        %1079 = vmatprep.subr.mxu0 0.0
        %1080 = vmatpush1.msra.mxu0 0.0
        %1081 = vmatprep.subr.mxu0 0.0
        %1082 = vmatpush1.msra.mxu0 0.0
        %1083 = vmatprep.subr.mxu0 0.0
        %1084 = vmatpush1.msra.mxu0 0.0
        %1085 = vmatprep.subr.mxu0 0.0
        %1086 = vmatpush1.msra.mxu0 0.0
        %1087 = vmatprep.subr.mxu0 0.0
        %1088 = vmatpush1.msra.mxu0 0.0
        %1089 = vmatprep.subr.mxu0 0.0
        %1090 = vmatpush1.msra.mxu0 0.0
        %1091 = vmatprep.subr.mxu0 0.0
        %1092 = vmatpush1.msra.mxu0 0.0
        %1093 = vmatprep.subr.mxu0 0.0
        %1094 = vmatpush1.msra.mxu0 0.0
        %1095 = vmatprep.subr.mxu0 0.0
        %1096 = vmatpush1.msra.mxu0 0.0
        %1097 = vmatprep.subr.mxu0 0.0
        %1098 = vmatpush1.msra.mxu0 0.0
        %1099 = vmatprep.subr.mxu0 0.0
        %1100 = vmatpush1.msra.mxu0 0.0
        %1101 = vmatprep.subr.mxu0 0.0
        %1102 = vmatpush1.msra.mxu0 0.0
        %1103 = vmatprep.subr.mxu0 0.0
        %1104 = vmatpush1.msra.mxu0 0.0
        %1105 = vmatprep.subr.mxu0 0.0
        %1106 = vmatpush1.msra.mxu0 0.0
        %1107 = vmatprep.subr.mxu0 0.0
        %1108 = vmatpush1.msra.mxu0 0.0
        %1109 = vmatprep.subr.mxu0 0.0
        %1110 = vmatpush1.msra.mxu0 0.0
        %1111 = vmatprep.subr.mxu0 0.0
        %1112 = vmatpush1.msra.mxu0 0.0
        %1113 = vmatprep.subr.mxu0 0.0
        %1114 = vmatpush1.msra.mxu0 0.0
        %1115 = vmatprep.subr.mxu0 0.0
        %1116 = vmatpush1.msra.mxu0 0.0
        %1117 = vmatprep.mubr.f32.mxu0 0.0
        %1118 = vmatmul.mubr.f32.gmra.mrb[0].mxu0 %v959
        %v1119 = vpop.f32.mrb[0].mxu0
        %v1120 = vadd.f32 0.0, %v1119
        %v1121 = vpop.f32.mrb[0].mxu0
        %v1122 = vadd.f32 0.0, %v1121
        %1123 = vmatprep.mubr.f32.mxu0 0.0
        %1124 = vmatmul.mubr.f32.gmra.mrb[0].mxu0 %v962
        %v1125 = vpop.f32.mrb[0].mxu0
        %v1126 = vadd.f32 0.0, %v1125
        %v1127 = vpop.f32.mrb[0].mxu0
        %v1128 = vadd.f32 0.0, %v1127
        %1129 = vdwg.mxu0
        %1130 = vmatprep.subr.mxu0 %v797
        %1131 = vmatpush1.msra.mxu0 %v796
        %1132 = vmatprep.subr.mxu0 %v839
        %1133 = vmatpush1.msra.mxu0 %v838
        %1134 = vmatprep.subr.mxu0 %v927
        %1135 = vmatpush1.msra.mxu0 %v945
        %1136 = vmatprep.subr.mxu0 %v974
        %1137 = vmatpush1.msra.mxu0 %v972
        %1138 = vmatprep.subr.mxu0 0.0
        %1139 = vmatpush1.msra.mxu0 0.0
        %1140 = vmatprep.subr.mxu0 0.0
        %1141 = vmatpush1.msra.mxu0 0.0
        %1142 = vmatprep.subr.mxu0 0.0
        %1143 = vmatpush1.msra.mxu0 0.0
        %1144 = vmatprep.subr.mxu0 0.0
        %1145 = vmatpush1.msra.mxu0 0.0
        %1146 = vmatprep.subr.mxu0 0.0
        %1147 = vmatpush1.msra.mxu0 0.0
        %1148 = vmatprep.subr.mxu0 0.0
        %1149 = vmatpush1.msra.mxu0 0.0
        %1150 = vmatprep.subr.mxu0 0.0
        %1151 = vmatpush1.msra.mxu0 0.0
        %1152 = vmatprep.subr.mxu0 0.0
        %1153 = vmatpush1.msra.mxu0 0.0
        %1154 = vmatprep.subr.mxu0 0.0
        %1155 = vmatpush1.msra.mxu0 0.0
        %1156 = vmatprep.subr.mxu0 0.0
        %1157 = vmatpush1.msra.mxu0 0.0
        %1158 = vmatprep.subr.mxu0 0.0
        %1159 = vmatpush1.msra.mxu0 0.0
        %1160 = vmatprep.subr.mxu0 0.0
        %1161 = vmatpush1.msra.mxu0 0.0
        %1162 = vmatprep.subr.mxu0 0.0
        %1163 = vmatpush1.msra.mxu0 0.0
        %1164 = vmatprep.subr.mxu0 0.0
        %1165 = vmatpush1.msra.mxu0 0.0
        %1166 = vmatprep.subr.mxu0 0.0
        %1167 = vmatpush1.msra.mxu0 0.0
        %1168 = vmatprep.subr.mxu0 0.0
        %1169 = vmatpush1.msra.mxu0 0.0
        %1170 = vmatprep.subr.mxu0 0.0
        %1171 = vmatpush1.msra.mxu0 0.0
        %1172 = vmatprep.subr.mxu0 0.0
        %1173 = vmatpush1.msra.mxu0 0.0
        %1174 = vmatprep.subr.mxu0 0.0
        %1175 = vmatpush1.msra.mxu0 0.0
        %1176 = vmatprep.subr.mxu0 0.0
        %1177 = vmatpush1.msra.mxu0 0.0
        %1178 = vmatprep.subr.mxu0 0.0
        %1179 = vmatpush1.msra.mxu0 0.0
        %1180 = vmatprep.subr.mxu0 0.0
        %1181 = vmatpush1.msra.mxu0 0.0
        %1182 = vmatprep.subr.mxu0 0.0
        %1183 = vmatpush1.msra.mxu0 0.0
        %1184 = vmatprep.subr.mxu0 0.0
        %1185 = vmatpush1.msra.mxu0 0.0
        %1186 = vmatprep.subr.mxu0 0.0
        %1187 = vmatpush1.msra.mxu0 0.0
        %1188 = vmatprep.subr.mxu0 0.0
        %1189 = vmatpush1.msra.mxu0 0.0
        %1190 = vmatprep.subr.mxu0 0.0
        %1191 = vmatpush1.msra.mxu0 0.0
        %1192 = vmatprep.subr.mxu0 0.0
        %1193 = vmatpush1.msra.mxu0 0.0
        %1194 = vmatprep.mubr.f32.mxu0 0.0
        %1195 = vmatmul.mubr.f32.gmra.mrb[0].mxu0 %v959
        %v1196 = vpop.f32.mrb[0].mxu0
        %v1197 = vadd.f32 0.0, %v1196
        %v1198 = vpop.f32.mrb[0].mxu0
        %v1199 = vadd.f32 0.0, %v1198
        %1200 = vmatprep.mubr.f32.mxu0 0.0
        %1201 = vmatmul.mubr.f32.gmra.mrb[0].mxu0 %v962
        %v1202 = vpop.f32.mrb[0].mxu0
        %v1203 = vadd.f32 0.0, %v1202
        %v1204 = vpop.f32.mrb[0].mxu0
        %v1205 = vadd.f32 0.0, %v1204
        %1206 = vdwg.mxu0
        %1217 = vrot.lane.b32.xlu0 %v1043, 127
        %v1218 = vpop.permute.xlu0 %1217
        %1219 = vrot.lane.b32.xlu0 %v1045, 127
        %v1220 = vpop.permute.xlu0 %1219
        %1221 = vrot.lane.b32.xlu0 %v1120, 127
        %v1222 = vpop.permute.xlu0 %1221
        %1223 = vrot.lane.b32.xlu0 %v1122, 127
        %v1224 = vpop.permute.xlu0 %1223
        %1225 = vrot.lane.b32.xlu0 %v1197, 127
        %v1226 = vpop.permute.xlu0 %1225
        %1227 = vrot.lane.b32.xlu0 %v1049, 127
        %v1228 = vpop.permute.xlu0 %1227
        %1229 = vrot.lane.b32.xlu0 %v1051, 127
        %v1230 = vpop.permute.xlu0 %1229
        %1231 = vrot.lane.b32.xlu0 %v1126, 127
        %v1232 = vpop.permute.xlu0 %1231
        %1233 = vrot.lane.b32.xlu0 %v1128, 127
        %v1234 = vpop.permute.xlu0 %1233
        %1235 = vrot.lane.b32.xlu0 %v1203, 127
        %v1236 = vpop.permute.xlu0 %1235
        %v1237 = vsel %vm401, %v1218, %v1220
        %v1238 = vsel %vm401, %v1220, %v1222
        %v1239 = vsel %vm401, %v1222, %v1224
        %v1240 = vsel %vm401, %v1224, %v1226
        %v1241 = vsel %vm401, %v1228, %v1230
        %v1242 = vsel %vm401, %v1230, %v1232
        %v1243 = vsel %vm401, %v1232, %v1234
        %v1244 = vsel %vm401, %v1234, %v1236
        %v1255 = vmax.f32 %v1043, %v1237
        %v1256 = vmax.f32 %v1045, %v1238
        %v1257 = vmax.f32 %v1120, %v1239
        %v1258 = vmax.f32 %v1122, %v1240
        %v1259 = vmax.f32 %v1197, %v1226
        %v1260 = vmax.f32 %v1049, %v1241
        %v1261 = vmax.f32 %v1051, %v1242
        %v1262 = vmax.f32 %v1126, %v1243
        %v1263 = vmax.f32 %v1128, %v1244
        %v1264 = vmax.f32 %v1203, %v1236
        %1267 = vrot.lane.b32.xlu0 %v1199, 127
        %v1268 = vpop.permute.xlu0 %1267
        %1269 = vrot.lane.b32.xlu0 %v1205, 127
        %v1270 = vpop.permute.xlu0 %1269
        %v1271 = vsel %vm401, %v1226, %v1268
        %v1272 = vsel %vm401, %v1236, %v1270
        %v1277 = vmax.f32 %v1197, %v1271
        %v1278 = vmax.f32 %v1199, %v1268
        %v1279 = vmax.f32 %v1203, %v1272
        %v1280 = vmax.f32 %v1205, %v1270
        %1293 = vrot.lane.b32.xlu0 %v1255, 100
        %v1294 = vpop.permute.xlu0 %1293
        %1295 = vrot.lane.b32.xlu0 %v1256, 100
        %v1296 = vpop.permute.xlu0 %1295
        %1297 = vrot.lane.b32.xlu0 %v1257, 100
        %v1298 = vpop.permute.xlu0 %1297
        %1299 = vrot.lane.b32.xlu0 %v1258, 100
        %v1300 = vpop.permute.xlu0 %1299
        %1301 = vrot.lane.b32.xlu0 %v1277, 100
        %v1302 = vpop.permute.xlu0 %1301
        %1303 = vrot.lane.b32.xlu0 %v1278, 100
        %v1304 = vpop.permute.xlu0 %1303
        %1305 = vrot.lane.b32.xlu0 %v1260, 100
        %v1306 = vpop.permute.xlu0 %1305
        %1307 = vrot.lane.b32.xlu0 %v1261, 100
        %v1308 = vpop.permute.xlu0 %1307
        %1309 = vrot.lane.b32.xlu0 %v1262, 100
        %v1310 = vpop.permute.xlu0 %1309
        %1311 = vrot.lane.b32.xlu0 %v1263, 100
        %v1312 = vpop.permute.xlu0 %1311
        %1313 = vrot.lane.b32.xlu0 %v1279, 100
        %v1314 = vpop.permute.xlu0 %1313
        %1315 = vrot.lane.b32.xlu0 %v1280, 100
        %v1316 = vpop.permute.xlu0 %1315
        %v1317 = vsel %vm497, %v1294, %v1296
        %v1318 = vsel %vm497, %v1296, %v1298
        %v1319 = vsel %vm497, %v1298, %v1300
        %v1320 = vsel %vm497, %v1300, %v1302
        %v1321 = vsel %vm497, %v1302, %v1304
        %v1322 = vsel %vm497, %v1306, %v1308
        %v1323 = vsel %vm497, %v1308, %v1310
        %v1324 = vsel %vm497, %v1310, %v1312
        %v1325 = vsel %vm497, %v1312, %v1314
        %v1326 = vsel %vm497, %v1314, %v1316
        %v1337 = vmax.f32 %v1255, %v1317
        %v1338 = vmax.f32 %v1256, %v1318
        %v1339 = vmax.f32 %v1257, %v1319
        %v1340 = vmax.f32 %v1258, %v1320
        %v1341 = vmax.f32 %v1259, %v1321
        %v1342 = vmax.f32 %v1260, %v1322
        %v1343 = vmax.f32 %v1261, %v1323
        %v1344 = vmax.f32 %v1262, %v1324
        %v1345 = vmax.f32 %v1263, %v1325
        %v1346 = vmax.f32 %v1264, %v1326
        %v1347 = vmax.f32 %v1337, 0.0
        %v1348 = vmax.f32 %v1338, 0.0
        %v1349 = vmax.f32 %v1339, 0.0
        %v1350 = vmax.f32 %v1340, 0.0
        %v1351 = vmax.f32 %v1341, 0.0
        %v1352 = vmax.f32 %v1342, 0.0
        %v1353 = vmax.f32 %v1343, 0.0
        %v1354 = vmax.f32 %v1344, 0.0
        %v1355 = vmax.f32 %v1345, 0.0
        %v1356 = vmax.f32 %v1346, 0.0
        %v1357 = vpack.c.bf16 %v1352, %v1347
        %v1358 = vpack.c.bf16 %v1353, %v1348
        %v1359 = vpack.c.bf16 %v1354, %v1349
        %v1360 = vpack.c.bf16 %v1355, %v1350
        %v1361 = vpack.c.bf16 %v1356, %v1351
        %v1366 = vrot.slane %v1357, 3
        %v1367 = vrot.slane %v1358, 3
        %v1368 = vrot.slane %v1359, 3
        %v1369 = vrot.slane %v1360, 3
        %1370 = vrot.lane.b32.xlu0 %v1366, 126
        %v1371 = vpop.permute.xlu0 %1370
        %1372 = vrot.lane.b32.xlu0 %v1367, 126
        %v1373 = vpop.permute.xlu0 %1372
        %1374 = vrot.lane.b32.xlu0 %v1368, 126
        %v1375 = vpop.permute.xlu0 %1374
        %1376 = vrot.lane.b32.xlu0 %v1369, 126
        %v1377 = vpop.permute.xlu0 %1376
        %vm1378 = vcmask 1031168
        %v1379 = vsel %vm1378, %v1371, %v1373
        %v1380 = vsel %vm1378, %v1373, %v1375
        %v1381 = vsel %vm1378, %v1375, %v1377
        %v1382 = vrot.slane %v1357, 6
        %v1383 = vrot.slane %v1358, 6
        %v1384 = vrot.slane %v1359, 6
        %v1385 = vrot.slane %v1360, 6
        %1386 = vrot.lane.b32.xlu0 %v1382, 124
        %v1387 = vpop.permute.xlu0 %1386
        %1388 = vrot.lane.b32.xlu0 %v1383, 124
        %v1389 = vpop.permute.xlu0 %1388
        %1390 = vrot.lane.b32.xlu0 %v1384, 124
        %v1391 = vpop.permute.xlu0 %1390
        %1392 = vrot.lane.b32.xlu0 %v1385, 124
        %v1393 = vpop.permute.xlu0 %1392
        %vm1394 = vcmask 1014784
        %v1395 = vsel %vm1394, %v1387, %v1389
        %v1396 = vsel %vm1394, %v1389, %v1391
        %v1397 = vsel %vm1394, %v1391, %v1393
        %v1398 = vrot.slane %v1357, 1
        %v1399 = vrot.slane %v1358, 1
        %v1400 = vrot.slane %v1359, 1
        %v1401 = vrot.slane %v1360, 1
        %1402 = vrot.lane.b32.xlu0 %v1398, 122
        %v1403 = vpop.permute.xlu0 %1402
        %1404 = vrot.lane.b32.xlu0 %v1399, 122
        %v1405 = vpop.permute.xlu0 %1404
        %1406 = vrot.lane.b32.xlu0 %v1400, 122
        %v1407 = vpop.permute.xlu0 %1406
        %1408 = vrot.lane.b32.xlu0 %v1401, 122
        %v1409 = vpop.permute.xlu0 %1408
        %vm1410 = vcmask 998400
        %v1411 = vsel %vm1410, %v1403, %v1405
        %v1412 = vsel %vm1410, %v1405, %v1407
        %v1413 = vsel %vm1410, %v1407, %v1409
        %v1414 = vrot.slane %v1357, 4
        %v1415 = vrot.slane %v1358, 4
        %v1416 = vrot.slane %v1359, 4
        %v1417 = vrot.slane %v1360, 4
        %1418 = vrot.lane.b32.xlu0 %v1414, 120
        %v1419 = vpop.permute.xlu0 %1418
        %1420 = vrot.lane.b32.xlu0 %v1415, 120
        %v1421 = vpop.permute.xlu0 %1420
        %1422 = vrot.lane.b32.xlu0 %v1416, 120
        %v1423 = vpop.permute.xlu0 %1422
        %1424 = vrot.lane.b32.xlu0 %v1417, 120
        %v1425 = vpop.permute.xlu0 %1424
        %vm1426 = vcmask 982016
        %v1427 = vsel %vm1426, %v1419, %v1421
        %v1428 = vsel %vm1426, %v1421, %v1423
        %v1429 = vsel %vm1426, %v1423, %v1425
        %v1430 = vrot.slane %v1357, 7
        %v1431 = vrot.slane %v1358, 7
        %v1432 = vrot.slane %v1359, 7
        %v1433 = vrot.slane %v1360, 7
        %1434 = vrot.lane.b32.xlu0 %v1430, 72
        %v1435 = vpop.permute.xlu0 %1434
        %1436 = vrot.lane.b32.xlu0 %v1431, 72
        %v1437 = vpop.permute.xlu0 %1436
        %1438 = vrot.lane.b32.xlu0 %v1432, 72
        %v1439 = vpop.permute.xlu0 %1438
        %1440 = vrot.lane.b32.xlu0 %v1433, 72
        %v1441 = vpop.permute.xlu0 %1440
        %vm1442 = vcmask 588800
        %v1443 = vsel %vm1442, %v1435, %v1437
        %v1444 = vsel %vm1442, %v1437, %v1439
        %v1445 = vsel %vm1442, %v1439, %v1441
        %v1446 = vrot.slane %v1357, 2
        %v1447 = vrot.slane %v1358, 2
        %v1448 = vrot.slane %v1359, 2
        %v1449 = vrot.slane %v1360, 2
        %1450 = vrot.lane.b32.xlu0 %v1446, 70
        %v1451 = vpop.permute.xlu0 %1450
        %1452 = vrot.lane.b32.xlu0 %v1447, 70
        %v1453 = vpop.permute.xlu0 %1452
        %1454 = vrot.lane.b32.xlu0 %v1448, 70
        %v1455 = vpop.permute.xlu0 %1454
        %1456 = vrot.lane.b32.xlu0 %v1449, 70
        %v1457 = vpop.permute.xlu0 %1456
        %vm1458 = vcmask 572416
        %v1459 = vsel %vm1458, %v1451, %v1453
        %v1460 = vsel %vm1458, %v1453, %v1455
        %v1461 = vsel %vm1458, %v1455, %v1457
        %v1462 = vrot.slane %v1357, 5
        %v1463 = vrot.slane %v1358, 5
        %v1464 = vrot.slane %v1359, 5
        %v1465 = vrot.slane %v1360, 5
        %1466 = vrot.lane.b32.xlu0 %v1462, 68
        %v1467 = vpop.permute.xlu0 %1466
        %1468 = vrot.lane.b32.xlu0 %v1463, 68
        %v1469 = vpop.permute.xlu0 %1468
        %1470 = vrot.lane.b32.xlu0 %v1464, 68
        %v1471 = vpop.permute.xlu0 %1470
        %1472 = vrot.lane.b32.xlu0 %v1465, 68
        %v1473 = vpop.permute.xlu0 %1472
        %vm1474 = vcmask 556032
        %v1475 = vsel %vm1474, %v1467, %v1469
        %v1476 = vsel %vm1474, %v1469, %v1471
        %v1477 = vsel %vm1474, %v1471, %v1473
        %1478 = vrot.lane.b32.xlu0 %v1357, 66
        %v1479 = vpop.permute.xlu0 %1478
        %1480 = vrot.lane.b32.xlu0 %v1358, 66
        %v1481 = vpop.permute.xlu0 %1480
        %1482 = vrot.lane.b32.xlu0 %v1359, 66
        %v1483 = vpop.permute.xlu0 %1482
        %1484 = vrot.lane.b32.xlu0 %v1360, 66
        %v1485 = vpop.permute.xlu0 %1484
        %vm1486 = vcmask 539648
        %v1487 = vsel %vm1486, %v1479, %v1481
        %v1488 = vsel %vm1486, %v1481, %v1483
        %v1489 = vsel %vm1486, %v1483, %v1485
        %1490 = vrot.lane.b32.xlu0 %v1366, 64
        %v1491 = vpop.permute.xlu0 %1490
        %1492 = vrot.lane.b32.xlu0 %v1367, 64
        %v1493 = vpop.permute.xlu0 %1492
        %1494 = vrot.lane.b32.xlu0 %v1368, 64
        %v1495 = vpop.permute.xlu0 %1494
        %1496 = vrot.lane.b32.xlu0 %v1369, 64
        %v1497 = vpop.permute.xlu0 %1496
        %vm1498 = vcmask 523264
        %v1499 = vsel %vm1498, %v1491, %v1493
        %v1500 = vsel %vm1498, %v1493, %v1495
        %v1501 = vsel %vm1498, %v1495, %v1497
        %v1503 = vrot.slane %v1361, 6
        %1504 = vrot.lane.b32.xlu0 %v1382, 16
        %v1505 = vpop.permute.xlu0 %1504
        %1506 = vrot.lane.b32.xlu0 %v1383, 16
        %v1507 = vpop.permute.xlu0 %1506
        %1508 = vrot.lane.b32.xlu0 %v1384, 16
        %v1509 = vpop.permute.xlu0 %1508
        %1510 = vrot.lane.b32.xlu0 %v1385, 16
        %v1511 = vpop.permute.xlu0 %1510
        %1512 = vrot.lane.b32.xlu0 %v1503, 16
        %v1513 = vpop.permute.xlu0 %1512
        %vm1514 = vcmask 130048
        %v1515 = vsel %vm1514, %v1505, %v1507
        %v1516 = vsel %vm1514, %v1507, %v1509
        %v1517 = vsel %vm1514, %v1509, %v1511
        %v1518 = vsel %vm1514, %v1511, %v1513
        %v1519 = vrot.slane %v1361, 1
        %1520 = vrot.lane.b32.xlu0 %v1398, 14
        %v1521 = vpop.permute.xlu0 %1520
        %1522 = vrot.lane.b32.xlu0 %v1399, 14
        %v1523 = vpop.permute.xlu0 %1522
        %1524 = vrot.lane.b32.xlu0 %v1400, 14
        %v1525 = vpop.permute.xlu0 %1524
        %1526 = vrot.lane.b32.xlu0 %v1401, 14
        %v1527 = vpop.permute.xlu0 %1526
        %1528 = vrot.lane.b32.xlu0 %v1519, 14
        %v1529 = vpop.permute.xlu0 %1528
        %vm1530 = vcmask 113664
        %v1531 = vsel %vm1530, %v1521, %v1523
        %v1532 = vsel %vm1530, %v1523, %v1525
        %v1533 = vsel %vm1530, %v1525, %v1527
        %v1534 = vsel %vm1530, %v1527, %v1529
        %v1535 = vrot.slane %v1361, 4
        %1536 = vrot.lane.b32.xlu0 %v1414, 12
        %v1537 = vpop.permute.xlu0 %1536
        %1538 = vrot.lane.b32.xlu0 %v1415, 12
        %v1539 = vpop.permute.xlu0 %1538
        %1540 = vrot.lane.b32.xlu0 %v1416, 12
        %v1541 = vpop.permute.xlu0 %1540
        %1542 = vrot.lane.b32.xlu0 %v1417, 12
        %v1543 = vpop.permute.xlu0 %1542
        %1544 = vrot.lane.b32.xlu0 %v1535, 12
        %v1545 = vpop.permute.xlu0 %1544
        %vm1546 = vcmask 97280
        %v1547 = vsel %vm1546, %v1537, %v1539
        %v1548 = vsel %vm1546, %v1539, %v1541
        %v1549 = vsel %vm1546, %v1541, %v1543
        %v1550 = vsel %vm1546, %v1543, %v1545
        %v1551 = vrot.slane %v1361, 7
        %1552 = vrot.lane.b32.xlu0 %v1430, 10
        %v1553 = vpop.permute.xlu0 %1552
        %1554 = vrot.lane.b32.xlu0 %v1431, 10
        %v1555 = vpop.permute.xlu0 %1554
        %1556 = vrot.lane.b32.xlu0 %v1432, 10
        %v1557 = vpop.permute.xlu0 %1556
        %1558 = vrot.lane.b32.xlu0 %v1433, 10
        %v1559 = vpop.permute.xlu0 %1558
        %1560 = vrot.lane.b32.xlu0 %v1551, 10
        %v1561 = vpop.permute.xlu0 %1560
        %vm1562 = vcmask 80896
        %v1563 = vsel %vm1562, %v1553, %v1555
        %v1564 = vsel %vm1562, %v1555, %v1557
        %v1565 = vsel %vm1562, %v1557, %v1559
        %v1566 = vsel %vm1562, %v1559, %v1561
        %v1567 = vrot.slane %v1361, 2
        %1568 = vrot.lane.b32.xlu0 %v1446, 8
        %v1569 = vpop.permute.xlu0 %1568
        %1570 = vrot.lane.b32.xlu0 %v1447, 8
        %v1571 = vpop.permute.xlu0 %1570
        %1572 = vrot.lane.b32.xlu0 %v1448, 8
        %v1573 = vpop.permute.xlu0 %1572
        %1574 = vrot.lane.b32.xlu0 %v1449, 8
        %v1575 = vpop.permute.xlu0 %1574
        %1576 = vrot.lane.b32.xlu0 %v1567, 8
        %v1577 = vpop.permute.xlu0 %1576
        %vm1578 = vcmask 64512
        %v1579 = vsel %vm1578, %v1569, %v1571
        %v1580 = vsel %vm1578, %v1571, %v1573
        %v1581 = vsel %vm1578, %v1573, %v1575
        %v1582 = vsel %vm1578, %v1575, %v1577
        %v1583 = vrot.slane %v1361, 5
        %1584 = vrot.lane.b32.xlu0 %v1463, 88
        %v1585 = vpop.permute.xlu0 %1584
        %1586 = vrot.lane.b32.xlu0 %v1464, 88
        %v1587 = vpop.permute.xlu0 %1586
        %1588 = vrot.lane.b32.xlu0 %v1465, 88
        %v1589 = vpop.permute.xlu0 %1588
        %1590 = vrot.lane.b32.xlu0 %v1583, 88
        %v1591 = vpop.permute.xlu0 %1590
        %vm1592 = vcmask 719872
        %v1593 = vsel %vm1592, %v1585, %v1587
        %v1594 = vsel %vm1592, %v1587, %v1589
        %v1595 = vsel %vm1592, %v1589, %v1591
        %v1598 = vsel %vm777, %v1357, %v1379
        %v1602 = vsel %vm777, %v1358, %v1380
        %v1606 = vsel %vm777, %v1359, %v1381
        %v1610 = vsel %vm777, %v1360, %v1377
        %v1613 = vsel %vm756, %v1379, %v1395
        %v1615 = vsel %vm756, %v1380, %v1396
        %v1617 = vsel %vm756, %v1381, %v1397
        %v1619 = vsel %vm756, %v1377, %v1393
        %v1621 = vsel %vm791, %v1613, %v1411
        %v1624 = vsel %vm791, %v1615, %v1412
        %v1627 = vsel %vm791, %v1617, %v1413
        %v1630 = vsel %vm791, %v1619, %v1409
        %v1633 = vsel %vm770, %v1411, %v1427
        %v1636 = vsel %vm770, %v1412, %v1428
        %v1639 = vsel %vm770, %v1413, %v1429
        %v1642 = vsel %vm770, %v1409, %v1425
        %v1645 = vsel %vm749, %v1427, %v1443
        %v1647 = vsel %vm749, %v1428, %v1444
        %v1649 = vsel %vm749, %v1429, %v1445
        %v1651 = vsel %vm749, %v1425, %v1441
        %v1653 = vsel %vm784, %v1645, %v1459
        %v1656 = vsel %vm784, %v1647, %v1460
        %v1659 = vsel %vm784, %v1649, %v1461
        %v1662 = vsel %vm784, %v1651, %v1457
        %v1665 = vsel %vm763, %v1459, %v1475
        %v1668 = vsel %vm763, %v1460, %v1476
        %v1671 = vsel %vm763, %v1461, %v1477
        %v1674 = vsel %vm763, %v1457, %v1473
        %v1678 = vsel %vm777, %v1487, %v1499
        %v1682 = vsel %vm777, %v1488, %v1500
        %v1686 = vsel %vm777, %v1489, %v1501
        %v1690 = vsel %vm777, %v1485, %v1497
        %v1693 = vsel %vm756, %v1499, %v1515
        %v1695 = vsel %vm756, %v1500, %v1516
        %v1697 = vsel %vm756, %v1501, %v1517
        %v1699 = vsel %vm756, %v1497, %v1518
        %v1701 = vsel %vm791, %v1693, %v1531
        %v1704 = vsel %vm791, %v1695, %v1532
        %v1707 = vsel %vm791, %v1697, %v1533
        %v1710 = vsel %vm791, %v1699, %v1534
        %v1713 = vsel %vm770, %v1531, %v1547
        %v1716 = vsel %vm770, %v1532, %v1548
        %v1719 = vsel %vm770, %v1533, %v1549
        %v1722 = vsel %vm770, %v1534, %v1550
        %v1725 = vsel %vm749, %v1547, %v1563
        %v1727 = vsel %vm749, %v1548, %v1564
        %v1729 = vsel %vm749, %v1549, %v1565
        %v1731 = vsel %vm749, %v1550, %v1566
        %v1733 = vsel %vm784, %v1725, %v1579
        %v1736 = vsel %vm784, %v1727, %v1580
        %v1739 = vsel %vm784, %v1729, %v1581
        %v1742 = vsel %vm784, %v1731, %v1582
        %v1745 = vsel %vm763, %v1579, %v1593
        %v1748 = vsel %vm763, %v1580, %v1594
        %v1751 = vsel %vm763, %v1581, %v1595
        %v1754 = vsel %vm763, %v1582, %v1591
        %v1756 = vrot.slane %v1361, 3
        %1757 = vrot.lane.b32.xlu0 %v1756, 126
        %v1758 = vpop.permute.xlu0 %1757
        %v1759 = vsel %vm1378, %v1377, %v1758
        %1760 = vrot.lane.b32.xlu0 %v1503, 124
        %v1761 = vpop.permute.xlu0 %1760
        %v1762 = vsel %vm1394, %v1393, %v1761
        %1763 = vrot.lane.b32.xlu0 %v1519, 122
        %v1764 = vpop.permute.xlu0 %1763
        %v1765 = vsel %vm1410, %v1409, %v1764
        %1766 = vrot.lane.b32.xlu0 %v1415, 74
        %v1767 = vpop.permute.xlu0 %1766
        %1768 = vrot.lane.b32.xlu0 %v1416, 74
        %v1769 = vpop.permute.xlu0 %1768
        %1770 = vrot.lane.b32.xlu0 %v1417, 74
        %v1771 = vpop.permute.xlu0 %1770
        %1772 = vrot.lane.b32.xlu0 %v1535, 74
        %v1773 = vpop.permute.xlu0 %1772
        %vm1774 = vcmask 605184
        %v1775 = vsel %vm1774, %v1767, %v1769
        %v1776 = vsel %vm1774, %v1769, %v1771
        %v1777 = vsel %vm1774, %v1771, %v1773
        %1778 = vrot.lane.b32.xlu0 %v1551, 72
        %v1779 = vpop.permute.xlu0 %1778
        %v1780 = vsel %vm1442, %v1441, %v1779
        %1781 = vrot.lane.b32.xlu0 %v1567, 70
        %v1782 = vpop.permute.xlu0 %1781
        %v1783 = vsel %vm1458, %v1457, %v1782
        %1784 = vrot.lane.b32.xlu0 %v1583, 68
        %v1785 = vpop.permute.xlu0 %1784
        %v1786 = vsel %vm1474, %v1473, %v1785
        %1787 = vrot.lane.b32.xlu0 %v1361, 66
        %v1788 = vpop.permute.xlu0 %1787
        %v1789 = vsel %vm1486, %v1485, %v1788
        %v1791 = vsel %vm777, %v1360, %v1759
        %v1794 = vsel %vm777, %v1361, %v1758
        %v1796 = vsel %vm756, %v1759, %v1762
        %v1798 = vsel %vm756, %v1758, %v1761
        %v1800 = vsel %vm791, %v1796, %v1765
        %v1802 = vsel %vm791, %v1798, %v1764
        %v1804 = vsel %vm770, %v1412, %v1775
        %v1806 = vsel %vm770, %v1413, %v1776
        %v1808 = vsel %vm770, %v1765, %v1777
        %v1810 = vsel %vm770, %v1764, %v1773
        %v1811 = vsel %vm749, %v1775, %v1444
        %v1812 = vsel %vm749, %v1776, %v1445
        %v1814 = vsel %vm749, %v1777, %v1780
        %v1816 = vsel %vm749, %v1773, %v1779
        %v1817 = vsel %vm784, %v1811, %v1460
        %v1818 = vsel %vm784, %v1812, %v1461
        %v1820 = vsel %vm784, %v1814, %v1783
        %v1822 = vsel %vm784, %v1816, %v1782
        %v1824 = vsel %vm763, %v1783, %v1786
        %v1826 = vsel %vm763, %v1782, %v1785
        %1847 = vrot.lane.b32.xlu0 %v1602, 86
        %v1848 = vpop.permute.xlu0 %1847
        %1849 = vrot.lane.b32.xlu0 %v1606, 86
        %v1850 = vpop.permute.xlu0 %1849
        %1851 = vrot.lane.b32.xlu0 %v1791, 86
        %v1852 = vpop.permute.xlu0 %1851
        %1853 = vrot.lane.b32.xlu0 %v1794, 86
        %v1854 = vpop.permute.xlu0 %1853
        %1855 = vrot.lane.b32.xlu0 %v1624, 86
        %v1856 = vpop.permute.xlu0 %1855
        %1857 = vrot.lane.b32.xlu0 %v1627, 86
        %v1858 = vpop.permute.xlu0 %1857
        %1859 = vrot.lane.b32.xlu0 %v1800, 86
        %v1860 = vpop.permute.xlu0 %1859
        %1861 = vrot.lane.b32.xlu0 %v1802, 86
        %v1862 = vpop.permute.xlu0 %1861
        %1863 = vrot.lane.b32.xlu0 %v1804, 86
        %v1864 = vpop.permute.xlu0 %1863
        %1865 = vrot.lane.b32.xlu0 %v1806, 86
        %v1866 = vpop.permute.xlu0 %1865
        %1867 = vrot.lane.b32.xlu0 %v1808, 86
        %v1868 = vpop.permute.xlu0 %1867
        %1869 = vrot.lane.b32.xlu0 %v1810, 86
        %v1870 = vpop.permute.xlu0 %1869
        %1871 = vrot.lane.b32.xlu0 %v1817, 86
        %v1872 = vpop.permute.xlu0 %1871
        %1873 = vrot.lane.b32.xlu0 %v1818, 86
        %v1874 = vpop.permute.xlu0 %1873
        %1875 = vrot.lane.b32.xlu0 %v1820, 86
        %v1876 = vpop.permute.xlu0 %1875
        %1877 = vrot.lane.b32.xlu0 %v1822, 86
        %v1878 = vpop.permute.xlu0 %1877
        %1879 = vrot.lane.b32.xlu0 %v1668, 86
        %v1880 = vpop.permute.xlu0 %1879
        %1881 = vrot.lane.b32.xlu0 %v1671, 86
        %v1882 = vpop.permute.xlu0 %1881
        %1883 = vrot.lane.b32.xlu0 %v1824, 86
        %v1884 = vpop.permute.xlu0 %1883
        %1885 = vrot.lane.b32.xlu0 %v1826, 86
        %v1886 = vpop.permute.xlu0 %1885
        %1887 = vrot.lane.b32.xlu0 %v1488, 86
        %v1888 = vpop.permute.xlu0 %1887
        %1889 = vrot.lane.b32.xlu0 %v1489, 86
        %v1890 = vpop.permute.xlu0 %1889
        %1891 = vrot.lane.b32.xlu0 %v1789, 86
        %v1892 = vpop.permute.xlu0 %1891
        %1893 = vrot.lane.b32.xlu0 %v1788, 86
        %v1894 = vpop.permute.xlu0 %1893
        %vm1895 = vcmask 703488
        %v1896 = vsel %vm1895, %v1848, %v1850
        %v1897 = vsel %vm1895, %v1850, %v1852
        %v1898 = vsel %vm1895, %v1852, %v1854
        %v1899 = vsel %vm1895, %v1856, %v1858
        %v1900 = vsel %vm1895, %v1858, %v1860
        %v1901 = vsel %vm1895, %v1860, %v1862
        %v1902 = vsel %vm1895, %v1864, %v1866
        %v1903 = vsel %vm1895, %v1866, %v1868
        %v1904 = vsel %vm1895, %v1868, %v1870
        %v1905 = vsel %vm1895, %v1872, %v1874
        %v1906 = vsel %vm1895, %v1874, %v1876
        %v1907 = vsel %vm1895, %v1876, %v1878
        %v1908 = vsel %vm1895, %v1880, %v1882
        %v1909 = vsel %vm1895, %v1882, %v1884
        %v1910 = vsel %vm1895, %v1884, %v1886
        %v1911 = vsel %vm1895, %v1888, %v1890
        %v1912 = vsel %vm1895, %v1890, %v1892
        %v1913 = vsel %vm1895, %v1892, %v1894
        %1935 = vset.pattern.permute.xlu0 0
        %1936 = vperm.xlu0 %1935, %v306
        %v1937 = vpop.permute.xlu0 %1936
        %1940 = vset.pattern.permute.xlu0 0
        %1941 = vperm.xlu0 %1940, %v307
        %v1942 = vpop.permute.xlu0 %1941
        %1945 = vset.pattern.permute.xlu0 0
        %1946 = vperm.xlu0 %1945, %v308
        %v1947 = vpop.permute.xlu0 %1946
        %v1952 = vunpack.c.l.b16 %v303
        %v1953 = vunpack.c.h.b16 %v303
        %v1954 = vunpack.c.l.b16 %v304
        %v1955 = vunpack.c.h.b16 %v304
        %v1956 = vunpack.c.l.b16 %v305
        %v1957 = vunpack.c.h.b16 %v305
        %v1958 = vpack.c.b16 %v1954, %v1952
        %v1959 = vpack.c.b16 %v1955, %v1953
        %v1960 = vpack.c.b16 %v1956, %v1956
        %v1961 = vpack.c.b16 %v1957, %v1957
        %vm1964 = vcmask 998400
        %v1966 = vsel %vm1964, %v1959, 0
        %v1969 = vsel %vm1964, %v1961, 0
        %v1972 = vsel %vm777, %v1911, 0
        %v1975 = vsel %vm777, %v1912, 0
        %v1978 = vsel %vm777, %v1913, 0
        %v1981 = vsel %vm777, %v1894, 0
        %1983 = vmatprep.subr.bf16.mxu0 %v1602
        %1984 = vmatpush1.bf16.msra.mxu0 %v1598
        %1985 = vmatprep.subr.bf16.mxu0 %v1624
        %1986 = vmatpush1.bf16.msra.mxu0 %v1621
        %1987 = vmatprep.subr.bf16.mxu0 %v1636
        %1988 = vmatpush1.bf16.msra.mxu0 %v1633
        %1989 = vmatprep.subr.bf16.mxu0 %v1656
        %1990 = vmatpush1.bf16.msra.mxu0 %v1653
        %1991 = vmatprep.subr.bf16.mxu0 %v1668
        %1992 = vmatpush1.bf16.msra.mxu0 %v1665
        %1993 = vmatprep.subr.bf16.mxu0 %v1682
        %1994 = vmatpush1.bf16.msra.mxu0 %v1678
        %1995 = vmatprep.subr.bf16.mxu0 %v1704
        %1996 = vmatpush1.bf16.msra.mxu0 %v1701
        %1997 = vmatprep.subr.bf16.mxu0 %v1716
        %1998 = vmatpush1.bf16.msra.mxu0 %v1713
        %1999 = vmatprep.subr.bf16.mxu0 %v1736
        %2000 = vmatpush1.bf16.msra.mxu0 %v1733
        %2001 = vmatprep.subr.bf16.mxu0 %v1748
        %2002 = vmatpush1.bf16.msra.mxu0 %v1745
        %2003 = vmatprep.subr.bf16.mxu0 %v1897
        %2004 = vmatpush1.bf16.msra.mxu0 %v1896
        %2005 = vmatprep.subr.bf16.mxu0 %v1900
        %2006 = vmatpush1.bf16.msra.mxu0 %v1899
        %2007 = vmatprep.subr.bf16.mxu0 %v1903
        %2008 = vmatpush1.bf16.msra.mxu0 %v1902
        %2009 = vmatprep.subr.bf16.mxu0 %v1906
        %2010 = vmatpush1.bf16.msra.mxu0 %v1905
        %2011 = vmatprep.subr.bf16.mxu0 %v1909
        %2012 = vmatpush1.bf16.msra.mxu0 %v1908
        %2013 = vmatprep.subr.bf16.mxu0 %v1975
        %2014 = vmatpush1.bf16.msra.mxu0 %v1972
        %2015 = vmatprep.mubr.bf16.mxu0 %v1966
        %2016 = vmatmul.mubr.bf16.gmra.mrb[0].mxu0 %v1958
        %v2017 = vpop.f32.mrb[0].mxu0
        %v2018 = vadd.f32 %v1937, %v2017
        %v2019 = vpop.f32.mrb[0].mxu0
        %v2020 = vadd.f32 %v1937, %v2019
        %v2021 = vpop.f32.mrb[0].mxu0
        %v2022 = vadd.f32 %v1942, %v2021
        %v2023 = vpop.f32.mrb[0].mxu0
        %v2024 = vadd.f32 %v1942, %v2023
        %2025 = vmatprep.mubr.bf16.mxu0 %v1969
        %2026 = vmatmul.mubr.bf16.gmra.mrb[0].mxu0 %v1960
        %v2027 = vpop.f32.mrb[0].mxu0
        %v2028 = vadd.f32 %v1947, %v2027
        %v2029 = vpop.f32.mrb[0].mxu0
        %v2030 = vadd.f32 %v1947, %v2029
        %v2031 = vpop.f32.mrb[0].mxu0
        %v2032 = vpop.f32.mrb[0].mxu0
        %2033 = vdwg.mxu0
        %2034 = vmatprep.subr.bf16.mxu0 %v1610
        %2035 = vmatpush1.bf16.msra.mxu0 %v1606
        %2036 = vmatprep.subr.bf16.mxu0 %v1630
        %2037 = vmatpush1.bf16.msra.mxu0 %v1627
        %2038 = vmatprep.subr.bf16.mxu0 %v1642
        %2039 = vmatpush1.bf16.msra.mxu0 %v1639
        %2040 = vmatprep.subr.bf16.mxu0 %v1662
        %2041 = vmatpush1.bf16.msra.mxu0 %v1659
        %2042 = vmatprep.subr.bf16.mxu0 %v1674
        %2043 = vmatpush1.bf16.msra.mxu0 %v1671
        %2044 = vmatprep.subr.bf16.mxu0 %v1690
        %2045 = vmatpush1.bf16.msra.mxu0 %v1686
        %2046 = vmatprep.subr.bf16.mxu0 %v1710
        %2047 = vmatpush1.bf16.msra.mxu0 %v1707
        %2048 = vmatprep.subr.bf16.mxu0 %v1722
        %2049 = vmatpush1.bf16.msra.mxu0 %v1719
        %2050 = vmatprep.subr.bf16.mxu0 %v1742
        %2051 = vmatpush1.bf16.msra.mxu0 %v1739
        %2052 = vmatprep.subr.bf16.mxu0 %v1754
        %2053 = vmatpush1.bf16.msra.mxu0 %v1751
        %2054 = vmatprep.subr.bf16.mxu0 %v1854
        %2055 = vmatpush1.bf16.msra.mxu0 %v1898
        %2056 = vmatprep.subr.bf16.mxu0 %v1862
        %2057 = vmatpush1.bf16.msra.mxu0 %v1901
        %2058 = vmatprep.subr.bf16.mxu0 %v1870
        %2059 = vmatpush1.bf16.msra.mxu0 %v1904
        %2060 = vmatprep.subr.bf16.mxu0 %v1878
        %2061 = vmatpush1.bf16.msra.mxu0 %v1907
        %2062 = vmatprep.subr.bf16.mxu0 %v1886
        %2063 = vmatpush1.bf16.msra.mxu0 %v1910
        %2064 = vmatprep.subr.bf16.mxu0 %v1981
        %2065 = vmatpush1.bf16.msra.mxu0 %v1978
        %2066 = vmatprep.mubr.bf16.mxu0 %v1966
        %2067 = vmatmul.mubr.bf16.gmra.mrb[0].mxu0 %v1958
        %v2068 = vpop.f32.mrb[0].mxu0
        %v2069 = vadd.f32 %v1937, %v2068
        %v2070 = vpop.f32.mrb[0].mxu0
        %v2071 = vadd.f32 %v1937, %v2070
        %v2072 = vpop.f32.mrb[0].mxu0
        %v2073 = vadd.f32 %v1942, %v2072
        %v2074 = vpop.f32.mrb[0].mxu0
        %v2075 = vadd.f32 %v1942, %v2074
        %2076 = vmatprep.mubr.bf16.mxu0 %v1969
        %2077 = vmatmul.mubr.bf16.gmra.mrb[0].mxu0 %v1960
        %v2078 = vpop.f32.mrb[0].mxu0
        %v2079 = vadd.f32 %v1947, %v2078
        %v2080 = vpop.f32.mrb[0].mxu0
        %v2081 = vadd.f32 %v1947, %v2080
        %v2082 = vpop.f32.mrb[0].mxu0
        %v2083 = vpop.f32.mrb[0].mxu0
        %2084 = vdwg.mxu0
        %2094 = vrot.lane.b32.xlu0 %v2018, 126
        %v2095 = vpop.permute.xlu0 %2094
        %2096 = vrot.lane.b32.xlu0 %v2020, 126
        %v2097 = vpop.permute.xlu0 %2096
        %2098 = vrot.lane.b32.xlu0 %v2069, 126
        %v2099 = vpop.permute.xlu0 %2098
        %2100 = vrot.lane.b32.xlu0 %v2022, 126
        %v2101 = vpop.permute.xlu0 %2100
        %2102 = vrot.lane.b32.xlu0 %v2024, 126
        %v2103 = vpop.permute.xlu0 %2102
        %2104 = vrot.lane.b32.xlu0 %v2073, 126
        %v2105 = vpop.permute.xlu0 %2104
        %2106 = vrot.lane.b32.xlu0 %v2028, 126
        %v2107 = vpop.permute.xlu0 %2106
        %2108 = vrot.lane.b32.xlu0 %v2030, 126
        %v2109 = vpop.permute.xlu0 %2108
        %2110 = vrot.lane.b32.xlu0 %v2079, 126
        %v2111 = vpop.permute.xlu0 %2110
        %v2112 = vsel %vm425, %v2095, %v2097
        %v2113 = vsel %vm425, %v2097, %v2099
        %v2114 = vsel %vm425, %v2101, %v2103
        %v2115 = vsel %vm425, %v2103, %v2105
        %v2116 = vsel %vm425, %v2107, %v2109
        %v2117 = vsel %vm425, %v2109, %v2111
        %v2127 = vmax.f32 %v2018, %v2112
        %v2128 = vmax.f32 %v2020, %v2113
        %v2129 = vmax.f32 %v2069, %v2099
        %v2130 = vmax.f32 %v2022, %v2114
        %v2131 = vmax.f32 %v2024, %v2115
        %v2132 = vmax.f32 %v2073, %v2105
        %v2133 = vmax.f32 %v2028, %v2116
        %v2134 = vmax.f32 %v2030, %v2117
        %v2135 = vmax.f32 %v2079, %v2111
        %2139 = vrot.lane.b32.xlu0 %v2071, 126
        %v2140 = vpop.permute.xlu0 %2139
        %2141 = vrot.lane.b32.xlu0 %v2075, 126
        %v2142 = vpop.permute.xlu0 %2141
        %2143 = vrot.lane.b32.xlu0 %v2081, 126
        %v2144 = vpop.permute.xlu0 %2143
        %v2145 = vsel %vm425, %v2099, %v2140
        %v2146 = vsel %vm425, %v2105, %v2142
        %v2147 = vsel %vm425, %v2111, %v2144
        %v2154 = vmax.f32 %v2069, %v2145
        %v2155 = vmax.f32 %v2071, %v2140
        %v2156 = vmax.f32 %v2073, %v2146
        %v2157 = vmax.f32 %v2075, %v2142
        %v2158 = vmax.f32 %v2079, %v2147
        %v2159 = vmax.f32 %v2081, %v2144
        %2172 = vrot.lane.b32.xlu0 %v2127, 72
        %v2173 = vpop.permute.xlu0 %2172
        %2174 = vrot.lane.b32.xlu0 %v2128, 72
        %v2175 = vpop.permute.xlu0 %2174
        %2176 = vrot.lane.b32.xlu0 %v2154, 72
        %v2177 = vpop.permute.xlu0 %2176
        %2178 = vrot.lane.b32.xlu0 %v2155, 72
        %v2179 = vpop.permute.xlu0 %2178
        %2180 = vrot.lane.b32.xlu0 %v2130, 72
        %v2181 = vpop.permute.xlu0 %2180
        %2182 = vrot.lane.b32.xlu0 %v2131, 72
        %v2183 = vpop.permute.xlu0 %2182
        %2184 = vrot.lane.b32.xlu0 %v2156, 72
        %v2185 = vpop.permute.xlu0 %2184
        %2186 = vrot.lane.b32.xlu0 %v2157, 72
        %v2187 = vpop.permute.xlu0 %2186
        %2188 = vrot.lane.b32.xlu0 %v2133, 72
        %v2189 = vpop.permute.xlu0 %2188
        %2190 = vrot.lane.b32.xlu0 %v2134, 72
        %v2191 = vpop.permute.xlu0 %2190
        %2192 = vrot.lane.b32.xlu0 %v2158, 72
        %v2193 = vpop.permute.xlu0 %2192
        %2194 = vrot.lane.b32.xlu0 %v2159, 72
        %v2195 = vpop.permute.xlu0 %2194
        %v2196 = vsel %vm617, %v2173, %v2175
        %v2197 = vsel %vm617, %v2175, %v2177
        %v2198 = vsel %vm617, %v2177, %v2179
        %v2199 = vsel %vm617, %v2181, %v2183
        %v2200 = vsel %vm617, %v2183, %v2185
        %v2201 = vsel %vm617, %v2185, %v2187
        %v2202 = vsel %vm617, %v2189, %v2191
        %v2203 = vsel %vm617, %v2191, %v2193
        %v2204 = vsel %vm617, %v2193, %v2195
        %v2214 = vmax.f32 %v2127, %v2196
        %v2215 = vmax.f32 %v2128, %v2197
        %v2216 = vmax.f32 %v2129, %v2198
        %v2217 = vmax.f32 %v2130, %v2199
        %v2218 = vmax.f32 %v2131, %v2200
        %v2219 = vmax.f32 %v2132, %v2201
        %v2220 = vmax.f32 %v2133, %v2202
        %v2221 = vmax.f32 %v2134, %v2203
        %v2222 = vmax.f32 %v2135, %v2204
        %v2223 = vmax.f32 %v2214, 0.0
        %v2224 = vmax.f32 %v2215, 0.0
        %v2225 = vmax.f32 %v2216, 0.0
        %v2226 = vmax.f32 %v2217, 0.0
        %v2227 = vmax.f32 %v2218, 0.0
        %v2228 = vmax.f32 %v2219, 0.0
        %v2229 = vmax.f32 %v2220, 0.0
        %v2230 = vmax.f32 %v2221, 0.0
        %v2231 = vmax.f32 %v2222, 0.0
        %2233 = vset.pattern.permute.xlu0 0
        %2234 = vperm.xlu0 %2233, %v2223
        %v2235 = vpop.permute.xlu0 %2234
        %2238 = vset.pattern.permute.xlu0 0
        %2239 = vperm.xlu0 %2238, %v2226
        %v2240 = vpop.permute.xlu0 %2239
        %2243 = vset.pattern.permute.xlu0 0
        %2244 = vperm.xlu0 %2243, %v2229
        %v2245 = vpop.permute.xlu0 %2244
        %v2247 = vmul.f32 %v309, %v2235
        %v2248 = vmul.f32 %v310, %v2240
        %v2249 = vmul.f32 %v311, %v2245
        %2250 = vset.pattern.permute.xlu0 4
        %2251 = vperm.xlu0 %2250, %v2223
        %v2252 = vpop.permute.xlu0 %2251
        %2254 = vset.pattern.permute.xlu0 4
        %2255 = vperm.xlu0 %2254, %v2226
        %v2256 = vpop.permute.xlu0 %2255
        %2258 = vset.pattern.permute.xlu0 4
        %2259 = vperm.xlu0 %2258, %v2229
        %v2260 = vpop.permute.xlu0 %2259
        %v2262 = vmul.f32 %v312, %v2252
        %v2263 = vmul.f32 %v313, %v2256
        %v2264 = vmul.f32 %v314, %v2260
        %v2265 = vadd.f32 %v2247, %v2262
        %v2266 = vadd.f32 %v2248, %v2263
        %v2267 = vadd.f32 %v2249, %v2264
        %2268 = vset.pattern.permute.xlu0 8
        %2269 = vperm.xlu0 %2268, %v2223
        %v2270 = vpop.permute.xlu0 %2269
        %2272 = vset.pattern.permute.xlu0 8
        %2273 = vperm.xlu0 %2272, %v2226
        %v2274 = vpop.permute.xlu0 %2273
        %2276 = vset.pattern.permute.xlu0 8
        %2277 = vperm.xlu0 %2276, %v2229
        %v2278 = vpop.permute.xlu0 %2277
        %v2280 = vmul.f32 %v315, %v2270
        %v2281 = vmul.f32 %v316, %v2274
        %v2282 = vmul.f32 %v317, %v2278
        %v2283 = vadd.f32 %v2265, %v2280
        %v2284 = vadd.f32 %v2266, %v2281
        %v2285 = vadd.f32 %v2267, %v2282
        %2286 = vset.pattern.permute.xlu0 12
        %2287 = vperm.xlu0 %2286, %v2223
        %v2288 = vpop.permute.xlu0 %2287
        %2290 = vset.pattern.permute.xlu0 12
        %2291 = vperm.xlu0 %2290, %v2226
        %v2292 = vpop.permute.xlu0 %2291
        %2294 = vset.pattern.permute.xlu0 12
        %2295 = vperm.xlu0 %2294, %v2229
        %v2296 = vpop.permute.xlu0 %2295
        %v2298 = vmul.f32 %v318, %v2288
        %v2299 = vmul.f32 %v319, %v2292
        %v2300 = vmul.f32 %v320, %v2296
        %v2301 = vadd.f32 %v2283, %v2298
        %v2302 = vadd.f32 %v2284, %v2299
        %v2303 = vadd.f32 %v2285, %v2300
        %2304 = vset.pattern.permute.xlu0 112
        %2305 = vperm.xlu0 %2304, %v2223
        %v2306 = vpop.permute.xlu0 %2305
        %2308 = vset.pattern.permute.xlu0 112
        %2309 = vperm.xlu0 %2308, %v2226
        %v2310 = vpop.permute.xlu0 %2309
        %2312 = vset.pattern.permute.xlu0 112
        %2313 = vperm.xlu0 %2312, %v2229
        %v2314 = vpop.permute.xlu0 %2313
        %v2316 = vmul.f32 %v321, %v2306
        %v2317 = vmul.f32 %v322, %v2310
        %v2318 = vmul.f32 %v323, %v2314
        %v2319 = vadd.f32 %v2301, %v2316
        %v2320 = vadd.f32 %v2302, %v2317
        %v2321 = vadd.f32 %v2303, %v2318
        %2322 = vset.pattern.permute.xlu0 116
        %2323 = vperm.xlu0 %2322, %v2223
        %v2324 = vpop.permute.xlu0 %2323
        %2326 = vset.pattern.permute.xlu0 116
        %2327 = vperm.xlu0 %2326, %v2226
        %v2328 = vpop.permute.xlu0 %2327
        %2330 = vset.pattern.permute.xlu0 116
        %2331 = vperm.xlu0 %2330, %v2229
        %v2332 = vpop.permute.xlu0 %2331
        %v2334 = vmul.f32 %v324, %v2324
        %v2335 = vmul.f32 %v325, %v2328
        %v2336 = vmul.f32 %v326, %v2332
        %v2337 = vadd.f32 %v2319, %v2334
        %v2338 = vadd.f32 %v2320, %v2335
        %v2339 = vadd.f32 %v2321, %v2336
        %2340 = vset.pattern.permute.xlu0 120
        %2341 = vperm.xlu0 %2340, %v2223
        %v2342 = vpop.permute.xlu0 %2341
        %2344 = vset.pattern.permute.xlu0 120
        %2345 = vperm.xlu0 %2344, %v2226
        %v2346 = vpop.permute.xlu0 %2345
        %2348 = vset.pattern.permute.xlu0 120
        %2349 = vperm.xlu0 %2348, %v2229
        %v2350 = vpop.permute.xlu0 %2349
        %v2352 = vmul.f32 %v327, %v2342
        %v2353 = vmul.f32 %v328, %v2346
        %v2354 = vmul.f32 %v329, %v2350
        %v2355 = vadd.f32 %v2337, %v2352
        %v2356 = vadd.f32 %v2338, %v2353
        %v2357 = vadd.f32 %v2339, %v2354
        %2358 = vset.pattern.permute.xlu0 124
        %2359 = vperm.xlu0 %2358, %v2223
        %v2360 = vpop.permute.xlu0 %2359
        %2362 = vset.pattern.permute.xlu0 124
        %2363 = vperm.xlu0 %2362, %v2226
        %v2364 = vpop.permute.xlu0 %2363
        %2366 = vset.pattern.permute.xlu0 124
        %2367 = vperm.xlu0 %2366, %v2229
        %v2368 = vpop.permute.xlu0 %2367
        %v2370 = vmul.f32 %v330, %v2360
        %v2371 = vmul.f32 %v331, %v2364
        %v2372 = vmul.f32 %v332, %v2368
        %v2373 = vadd.f32 %v2355, %v2370
        %v2374 = vadd.f32 %v2356, %v2371
        %v2375 = vadd.f32 %v2357, %v2372
        %2377 = vset.pattern.permute.xlu0 96
        %2378 = vperm.xlu0 %2377, %v2224
        %v2379 = vpop.permute.xlu0 %2378
        %2382 = vset.pattern.permute.xlu0 96
        %2383 = vperm.xlu0 %2382, %v2227
        %v2384 = vpop.permute.xlu0 %2383
        %2387 = vset.pattern.permute.xlu0 96
        %2388 = vperm.xlu0 %2387, %v2230
        %v2389 = vpop.permute.xlu0 %2388
        %v2391 = vmul.f32 %v333, %v2379
        %v2392 = vmul.f32 %v334, %v2384
        %v2393 = vmul.f32 %v335, %v2389
        %v2394 = vadd.f32 %v2373, %v2391
        %v2395 = vadd.f32 %v2374, %v2392
        %v2396 = vadd.f32 %v2375, %v2393
        %2397 = vset.pattern.permute.xlu0 100
        %2398 = vperm.xlu0 %2397, %v2224
        %v2399 = vpop.permute.xlu0 %2398
        %2401 = vset.pattern.permute.xlu0 100
        %2402 = vperm.xlu0 %2401, %v2227
        %v2403 = vpop.permute.xlu0 %2402
        %2405 = vset.pattern.permute.xlu0 100
        %2406 = vperm.xlu0 %2405, %v2230
        %v2407 = vpop.permute.xlu0 %2406
        %v2409 = vmul.f32 %v336, %v2399
        %v2410 = vmul.f32 %v337, %v2403
        %v2411 = vmul.f32 %v338, %v2407
        %v2412 = vadd.f32 %v2394, %v2409
        %v2413 = vadd.f32 %v2395, %v2410
        %v2414 = vadd.f32 %v2396, %v2411
        %2415 = vset.pattern.permute.xlu0 104
        %2416 = vperm.xlu0 %2415, %v2224
        %v2417 = vpop.permute.xlu0 %2416
        %2419 = vset.pattern.permute.xlu0 104
        %2420 = vperm.xlu0 %2419, %v2227
        %v2421 = vpop.permute.xlu0 %2420
        %2423 = vset.pattern.permute.xlu0 104
        %2424 = vperm.xlu0 %2423, %v2230
        %v2425 = vpop.permute.xlu0 %2424
        %v2427 = vmul.f32 %v339, %v2417
        %v2428 = vmul.f32 %v340, %v2421
        %v2429 = vmul.f32 %v341, %v2425
        %v2430 = vadd.f32 %v2412, %v2427
        %v2431 = vadd.f32 %v2413, %v2428
        %v2432 = vadd.f32 %v2414, %v2429
        %2433 = vset.pattern.permute.xlu0 108
        %2434 = vperm.xlu0 %2433, %v2224
        %v2435 = vpop.permute.xlu0 %2434
        %2437 = vset.pattern.permute.xlu0 108
        %2438 = vperm.xlu0 %2437, %v2227
        %v2439 = vpop.permute.xlu0 %2438
        %2441 = vset.pattern.permute.xlu0 108
        %2442 = vperm.xlu0 %2441, %v2230
        %v2443 = vpop.permute.xlu0 %2442
        %v2445 = vmul.f32 %v342, %v2435
        %v2446 = vmul.f32 %v343, %v2439
        %v2447 = vmul.f32 %v344, %v2443
        %v2448 = vadd.f32 %v2430, %v2445
        %v2449 = vadd.f32 %v2431, %v2446
        %v2450 = vadd.f32 %v2432, %v2447
        %2452 = vset.pattern.permute.xlu0 80
        %2453 = vperm.xlu0 %2452, %v2225
        %v2454 = vpop.permute.xlu0 %2453
        %2457 = vset.pattern.permute.xlu0 80
        %2458 = vperm.xlu0 %2457, %v2228
        %v2459 = vpop.permute.xlu0 %2458
        %2462 = vset.pattern.permute.xlu0 80
        %2463 = vperm.xlu0 %2462, %v2231
        %v2464 = vpop.permute.xlu0 %2463
        %v2466 = vmul.f32 %v345, %v2454
        %v2467 = vmul.f32 %v346, %v2459
        %v2468 = vmul.f32 %v347, %v2464
        %v2469 = vadd.f32 %v2448, %v2466
        %v2470 = vadd.f32 %v2449, %v2467
        %v2471 = vadd.f32 %v2450, %v2468
        %2472 = vset.pattern.permute.xlu0 84
        %2473 = vperm.xlu0 %2472, %v2225
        %v2474 = vpop.permute.xlu0 %2473
        %2476 = vset.pattern.permute.xlu0 84
        %2477 = vperm.xlu0 %2476, %v2228
        %v2478 = vpop.permute.xlu0 %2477
        %2480 = vset.pattern.permute.xlu0 84
        %2481 = vperm.xlu0 %2480, %v2231
        %v2482 = vpop.permute.xlu0 %2481
        %v2484 = vmul.f32 %v348, %v2474
        %v2485 = vmul.f32 %v349, %v2478
        %v2486 = vmul.f32 %v350, %v2482
        %v2487 = vadd.f32 %v2469, %v2484
        %v2488 = vadd.f32 %v2470, %v2485
        %v2489 = vadd.f32 %v2471, %v2486
        %2490 = vset.pattern.permute.xlu0 88
        %2491 = vperm.xlu0 %2490, %v2225
        %v2492 = vpop.permute.xlu0 %2491
        %2494 = vset.pattern.permute.xlu0 88
        %2495 = vperm.xlu0 %2494, %v2228
        %v2496 = vpop.permute.xlu0 %2495
        %2498 = vset.pattern.permute.xlu0 88
        %2499 = vperm.xlu0 %2498, %v2231
        %v2500 = vpop.permute.xlu0 %2499
        %v2502 = vmul.f32 %v351, %v2492
        %v2503 = vmul.f32 %v352, %v2496
        %v2504 = vmul.f32 %v353, %v2500
        %v2505 = vadd.f32 %v2487, %v2502
        %v2506 = vadd.f32 %v2488, %v2503
        %v2507 = vadd.f32 %v2489, %v2504
        %2508 = vset.pattern.permute.xlu0 92
        %2509 = vperm.xlu0 %2508, %v2225
        %v2510 = vpop.permute.xlu0 %2509
        %2512 = vset.pattern.permute.xlu0 92
        %2513 = vperm.xlu0 %2512, %v2228
        %v2514 = vpop.permute.xlu0 %2513
        %2516 = vset.pattern.permute.xlu0 92
        %2517 = vperm.xlu0 %2516, %v2231
        %v2518 = vpop.permute.xlu0 %2517
        %v2520 = vmul.f32 %v354, %v2510
        %v2521 = vmul.f32 %v355, %v2514
        %v2522 = vmul.f32 %v356, %v2518
        %v2523 = vadd.f32 %v2505, %v2520
        %v2524 = vadd.f32 %v2506, %v2521
        %v2525 = vadd.f32 %v2507, %v2522
        %vm2526 = vcmask 408576
        %v2527 = vsel %vm2526, %v2523, 0.0
        %v2528 = vsel %vm2526, %v2524, 0.0
        %v2529 = vadd.f32 %v2527, %v2528
        %vm2530 = vcmask 404480
        %v2531 = vsel %vm2530, %v2525, 0.0
        %v2532 = vadd.f32 %v2529, %v2531
        %v2533 = vrot.slane %v2532, 4
        %v2534 = vadd.f32 %v2532, %v2533
        %v2535 = vrot.slane %v2534, 2
        %v2536 = vadd.f32 %v2534, %v2535
        %v2537 = vrot.slane %v2536, 1
        %v2538 = vadd.f32 %v2536, %v2537
        %v2539 = vadd.f32 %v2538, %v357
        %v2540 = vmax.f32 %v2539, 0.0
        %v2541 = vld [vmem:[%s6] sm:$0xff]
        %v2542 = vld [vmem:[%s6 + $0x8] sm:$0xff]
        %v2543 = vld [vmem:[%s6 + $0x10] sm:$0xff]
        %v2544 = vld [vmem:[%s6 + $0x18] sm:$0xff]
        %v2545 = vld [vmem:[%s6 + $0x20] sm:$0xff]
        %v2546 = vld [vmem:[%s6 + $0x28] sm:$0xff]
        %v2547 = vld [vmem:[%s6 + $0x30] sm:$0x3]
        %v2548 = vld [vmem:[%s7] sm:$0x1]
        %v2550 = vsel %vm2526, %v2540, 0
        %v2553 = vsel %vm756, %v2547, 0
        %2555 = vmatprep.subr.mxu0 0.0
        %2556 = vmatpush1.msra.mxu0 %v2541
        %2557 = vmatprep.subr.mxu0 0.0
        %2558 = vmatpush1.msra.mxu0 %v2542
        %2559 = vmatprep.subr.mxu0 0.0
        %2560 = vmatpush1.msra.mxu0 %v2543
        %2561 = vmatprep.subr.mxu0 0.0
        %2562 = vmatpush1.msra.mxu0 %v2544
        %2563 = vmatprep.subr.mxu0 0.0
        %2564 = vmatpush1.msra.mxu0 %v2545
        %2565 = vmatprep.subr.mxu0 0.0
        %2566 = vmatpush1.msra.mxu0 %v2546
        %2567 = vmatprep.subr.mxu0 0.0
        %2568 = vmatpush1.msra.mxu0 %v2553
        %2569 = vmatprep.subr.mxu0 0.0
        %2570 = vmatpush1.msra.mxu0 0.0
        %2571 = vmatprep.subr.mxu0 0.0
        %2572 = vmatpush1.msra.mxu0 0.0
        %2573 = vmatprep.subr.mxu0 0.0
        %2574 = vmatpush1.msra.mxu0 0.0
        %2575 = vmatprep.subr.mxu0 0.0
        %2576 = vmatpush1.msra.mxu0 0.0
        %2577 = vmatprep.subr.mxu0 0.0
        %2578 = vmatpush1.msra.mxu0 0.0
        %2579 = vmatprep.subr.mxu0 0.0
        %2580 = vmatpush1.msra.mxu0 0.0
        %2581 = vmatprep.subr.mxu0 0.0
        %2582 = vmatpush1.msra.mxu0 0.0
        %2583 = vmatprep.subr.mxu0 0.0
        %2584 = vmatpush1.msra.mxu0 0.0
        %2585 = vmatprep.subr.mxu0 0.0
        %2586 = vmatpush1.msra.mxu0 0.0
        %2587 = vmatprep.subr.mxu0 0.0
        %2588 = vmatpush1.msra.mxu0 0.0
        %2589 = vmatprep.subr.mxu0 0.0
        %2590 = vmatpush1.msra.mxu0 0.0
        %2591 = vmatprep.subr.mxu0 0.0
        %2592 = vmatpush1.msra.mxu0 0.0
        %2593 = vmatprep.subr.mxu0 0.0
        %2594 = vmatpush1.msra.mxu0 0.0
        %2595 = vmatprep.subr.mxu0 0.0
        %2596 = vmatpush1.msra.mxu0 0.0
        %2597 = vmatprep.subr.mxu0 0.0
        %2598 = vmatpush1.msra.mxu0 0.0
        %2599 = vmatprep.subr.mxu0 0.0
        %2600 = vmatpush1.msra.mxu0 0.0
        %2601 = vmatprep.subr.mxu0 0.0
        %2602 = vmatpush1.msra.mxu0 0.0
        %2603 = vmatprep.subr.mxu0 0.0
        %2604 = vmatpush1.msra.mxu0 0.0
        %2605 = vmatprep.subr.mxu0 0.0
        %2606 = vmatpush1.msra.mxu0 0.0
        %2607 = vmatprep.subr.mxu0 0.0
        %2608 = vmatpush1.msra.mxu0 0.0
        %2609 = vmatprep.subr.mxu0 0.0
        %2610 = vmatpush1.msra.mxu0 0.0
        %2611 = vmatprep.subr.mxu0 0.0
        %2612 = vmatpush1.msra.mxu0 0.0
        %2613 = vmatprep.subr.mxu0 0.0
        %2614 = vmatpush1.msra.mxu0 0.0
        %2615 = vmatprep.subr.mxu0 0.0
        %2616 = vmatpush1.msra.mxu0 0.0
        %2617 = vmatprep.subr.mxu0 0.0
        %2618 = vmatpush1.msra.mxu0 0.0
        %2619 = vmatprep.mubr.f32.mxu0 0.0
        %2620 = vmatmul.mubr.f32.gmra.mrb[0].mxu0 %v2550
        %v2621 = vpop.f32.mrb[0].mxu0
        %v2622 = vadd.f32 %v2548, %v2621
        %v2623 = vpop.f32.mrb[0].mxu0
        %2624 = vdwg.mxu0
        %v2625 = vmax.f32 %v2622, 0.0
        %vm2626 = vcmask 73728
        %2627 = vst.msk [vmem:[%s295] sm:$0x1] %vm2626, %v2625
        %s2628 = sand.u32 %s203, 1
        %s2629 = scalar_lea.sflag [#allocation3], %s2628
        %s2630 = sand.u32 %s203, 1
        %s2631 = scalar_lea.vmem [#allocation2], %s2630
        // Predicated region
        $region53: #{forward.1} parent=51 // pred_check
          %p2632 = pneg %p213
        $region54: #{forward.1} parent=51 // pred_check_branch
          %2634 = sbr.rel (%p2632) target = $region56
        $region55: #{forward.1} parent=51 // pred_region
          %s2636 = ssub.s32 16, 16
          %2637 = vsyncadd %s2629, %s2636
          %s2638 = smul.addr %s22, 16
          %s2639 = scalar_lea.hbm %s8, %s2638
          %s2641 = sshll.u32 %s2631, 4
          %s2642 = int_to_ptr.vmem [resolvable:$true] %s2641
          %2644 = dma.vmem_to_hbm [thread:$0]  %s2642, 16, %s2639, %s2629
        $region56: #{forward.1} parent=51 // pred_fallthru
          _
      $region52: #{forward.1} parent=5 // pred_fallthru
        _
      %p2645 = scmp.le.s32.totalorder 2, %s17
      // Predicated region
      $region57: #{forward.1} parent=5 // pred_check
        %p2646 = pneg %p2645
      $region58: #{forward.1} parent=5 // pred_check_branch
        %2648 = sbr.rel (%p2646) target = $region60
      $region59: #{forward.1} parent=5 // pred_region
        %s2649 = ssub.s32 %s17, 2
        // Predicated region
        $region61: #{forward.1} parent=59 // pred_check
          %p2650 = pneg %p219
        $region62: #{forward.1} parent=59 // pred_check_branch
          %2652 = sbr.rel (%p2650) target = $region64
        $region63: #{forward.1} parent=59 // pred_region
          %s2653 = sand.u32 %s204, 1
          %s2654 = scalar_lea.sflag [#allocation3], %s2653
          %s2655 = sand.u32 %s204, 1
          %s2656 = scalar_lea.vmem [#allocation2], %s2655
          %2657 = dma.done %s2654, 16
        $region64: #{forward.1} parent=59 // pred_fallthru
          _
      $region60: #{forward.1} parent=5 // pred_fallthru
        _
    $region6: #{forward.1} parent=1 // loop_footer
      %s21 = sadd.s32 1, %s17
    $region7: #{forward.1} parent=1 // loop_footer_branch
      %16 = sbr.rel target = $region3
    $region8: #{forward.1} parent=1 // loop_exit
      _
    %2658 = vsyncpa [#allocation3], 1
    %s2659 = scalar_lea.sflag [#allocation3], 1
    %2660 = vsyncpa %s2659, 1

</llo_original>
